<compile_context>
chip_gen: v7x
topology: tpu7x:2x2x1
jax: 0.10.0
libtpu: 0.0.40
codegen_flags: <defaults>
</compile_context>

<pallas_src>
import functools

import jax
import jax.numpy as jnp
from jax.experimental import pallas as pl
from jax.experimental.pallas import tpu as pltpu


def _context_kernel(x_ref, wk_ref, wv_ref, wq3_ref, wout3_ref, weff_ref,
                    m_sc, s_sc, ctx_sc, *, heads, dim_head, compute_dtype):
    """Pass 1: online-softmax context accumulation + fold of both 1x1 convs.

    Grid: (batch, n_tiles); the n-tile axis is a reduction ("arbitrary").
    Emits, per batch, W_eff (C_out, C_in) with
        W_eff = W_out . blockdiag_h(context_h^T) . W_q
    so the full module output is simply  W_eff @ x + bias  (pass 2).
    """
    j = pl.program_id(1)

    @pl.when(j == 0)
    def _init():
        m_sc[...] = jnp.full_like(m_sc, -jnp.inf)
        s_sc[...] = jnp.zeros_like(s_sc)
        ctx_sc[...] = jnp.zeros_like(ctx_sc)

    x = x_ref[0].astype(compute_dtype)                          # (C_in, n_tile)
    # k / v projections of this spatial tile (1x1 conv == matmul), f32 accumulate.
    k = jnp.dot(wk_ref[...].astype(compute_dtype), x,
                preferred_element_type=jnp.float32)             # (hidden, n_tile)
    v = jnp.dot(wv_ref[...].astype(compute_dtype), x,
                preferred_element_type=jnp.float32)             # (hidden, n_tile)
    n_tile = k.shape[1]

    # ---- online softmax over the (tiled) spatial axis; all stats in f32 ----
    m_old = m_sc[...]                                           # (hidden, 1)
    m_new = jnp.maximum(m_old, jnp.max(k, axis=1, keepdims=True))
    alpha = jnp.exp(m_old - m_new)                              # rescale factor
    p = jnp.exp(k - m_new)                                      # unnormalized weights
    s_sc[...] = alpha * s_sc[...] + jnp.sum(p, axis=1, keepdims=True)

    # Head-batched context update: ctx[h,d,e] += sum_n p[h,d,n] * v[h,e,n]
    # NOTE: dim_head should be a multiple of 8 (sublane) for the reshape to be free;
    # the module default dim_head=32 satisfies this.
    p3 = p.reshape(heads, dim_head, n_tile).astype(compute_dtype)
    v3 = v.reshape(heads, dim_head, n_tile).astype(compute_dtype)
    ctx_upd = jnp.einsum('hdn,hen->hde', p3, v3,
                         preferred_element_type=jnp.float32)    # (heads, d, d)
    ctx_sc[...] = alpha.reshape(heads, dim_head, 1) * ctx_sc[...] + ctx_upd
    m_sc[...] = m_new

    @pl.when(j == pl.num_programs(1) - 1)
    def _finalize():
        # Normalize the small (d, d) context rows (not the (d, N) k matrix).
        inv_s = pl.reciprocal(s_sc[...], approx=True)             # (hidden, 1), EUP
        ctx_n = ctx_sc[...] * inv_s.reshape(heads, dim_head, 1)   # (heads, d, d)
        # Fold to_out:   M[h,c,d] = sum_e W_out[h,c,e] * ctx_n[h,d,e]
        m3 = jnp.einsum('hce,hde->hcd', wout3_ref[...], ctx_n,
                        preferred_element_type=jnp.float32)       # (heads, C_out, d)
        # Fold the q projection:   W_eff = sum_h M[h] @ W_q[h]
        weff_h = jnp.einsum('hcd,hdk->hck', m3, wq3_ref[...],
                            preferred_element_type=jnp.float32)   # (heads, C_out, C_in)
        weff_ref[0] = jnp.sum(weff_h, axis=0).astype(weff_ref.dtype)


def _apply_kernel(x_ref, weff_ref, b_ref, o_ref, *, compute_dtype):
    """Pass 2: stream spatial tiles and apply the fused projection + bias."""
    x = x_ref[0].astype(compute_dtype)                           # (C_in, n_tile)
    w = weff_ref[0].astype(compute_dtype)                        # (C_out, C_in)
    y = jnp.dot(w, x, preferred_element_type=jnp.float32)        # (C_out, n_tile)
    o_ref[0] = (y + b_ref[...]).astype(o_ref.dtype)              # lane-dense store


def _pick_n_tile(n):
    for cand in (512, 256, 128):
        if n % cand == 0:
            return cand
    # TODO(synk): pad ragged N up to a multiple of 128 instead of a single full tile.
    return n


def global_mixing_pallas(x_nchw, w_qkv, w_out, b_out, *, heads, dim_head,
                         compute_dtype=jnp.bfloat16, n_tile=None):
    """GlobalMixing forward.

    x_nchw: (B, C, H, W);  w_qkv: (3*hidden, C) (no bias);  w_out: (C_out, hidden);
    b_out: (C_out,).  Returns (B, C_out, H, W) in x_nchw.dtype.
    """
    b, c, h, w = x_nchw.shape
    n = h * w
    hidden = heads * dim_head
    c_out = w_out.shape[0]
    assert w_qkv.shape == (3 * hidden, c)
    assert w_out.shape == (c_out, hidden)

    if n_tile is None:
        n_tile = _pick_n_tile(n)
    assert n % n_tile == 0
    nt = n // n_tile

    # Channel-first flattened-spatial layout: pure reshape, no transpose.
    x_flat = x_nchw.reshape(b, c, n)

    # Weight slices / head-major rearrangements (tiny, done once in plain JAX).
    wq3 = w_qkv[:hidden].reshape(heads, dim_head, c)               # (heads, d, C_in)
    wk = w_qkv[hidden:2 * hidden]                                  # (hidden, C_in)
    wv = w_qkv[2 * hidden:]                                        # (hidden, C_in)
    wout3 = jnp.transpose(w_out.reshape(c_out, heads, dim_head), (1, 0, 2))
    bias = b_out.reshape(c_out, 1)

    x_item = x_flat.dtype.itemsize
    w_item = w_qkv.dtype.itemsize
    w_bytes = (wq3.size + wk.size + wv.size + wout3.size) * w_item
    vmem_limit = 48 * 1024 * 1024   # explicit; fits v7x (64 MiB) / v6e / v5e budgets

    # ---------------- pass 1: context / W_eff ----------------
    ctx_cost = pl.CostEstimate(
        flops=b * n * (4 * hidden * c + 2 * hidden * dim_head),
        transcendentals=b * n * hidden,
        bytes_accessed=b * c * n * x_item + w_bytes + b * c_out * c * 4,
    )
    ctx_kernel = functools.partial(_context_kernel, heads=heads,
                                   dim_head=dim_head, compute_dtype=compute_dtype)
    weff = pl.pallas_call(
        ctx_kernel,
        out_shape=jax.ShapeDtypeStruct((b, c_out, c), jnp.float32),
        grid_spec=pltpu.PrefetchScalarGridSpec(
            num_scalar_prefetch=0,
            grid=(b, nt),
            in_specs=[
                pl.BlockSpec((1, c, n_tile), lambda bi, j: (bi, 0, j)),
                pl.BlockSpec((hidden, c), lambda bi, j: (0, 0)),
                pl.BlockSpec((hidden, c), lambda bi, j: (0, 0)),
                pl.BlockSpec((heads, dim_head, c), lambda bi, j: (0, 0, 0)),
                pl.BlockSpec((heads, c_out, dim_head), lambda bi, j: (0, 0, 0)),
            ],
            out_specs=pl.BlockSpec((1, c_out, c), lambda bi, j: (bi, 0, 0)),
            scratch_shapes=[
                pltpu.VMEM((hidden, 1), jnp.float32),                  # running max
                pltpu.VMEM((hidden, 1), jnp.float32),                  # running sum
                pltpu.VMEM((heads, dim_head, dim_head), jnp.float32),  # context acc
            ],
        ),
        compiler_params=pltpu.CompilerParams(
            dimension_semantics=("parallel", "arbitrary"),
            vmem_limit_bytes=vmem_limit,
        ),
        cost_estimate=ctx_cost,
    )(x_flat, wk, wv, wq3, wout3)

    # ---------------- pass 2: apply fused projection ----------------
    apply_cost = pl.CostEstimate(
        flops=2 * b * n * c_out * c,
        transcendentals=0,
        bytes_accessed=(b * c * n * x_item + b * c_out * c * 4
                        + c_out * 4 + b * c_out * n * x_item),
    )
    apply_kernel = functools.partial(_apply_kernel, compute_dtype=compute_dtype)
    out_flat = pl.pallas_call(
        apply_kernel,
        out_shape=jax.ShapeDtypeStruct((b, c_out, n), x_nchw.dtype),
        grid_spec=pltpu.PrefetchScalarGridSpec(
            num_scalar_prefetch=0,
            grid=(b, nt),
            in_specs=[
                pl.BlockSpec((1, c, n_tile), lambda bi, j: (bi, 0, j)),
                pl.BlockSpec((1, c_out, c), lambda bi, j: (bi, 0, 0)),
                pl.BlockSpec((c_out, 1), lambda bi, j: (0, 0)),
            ],
            out_specs=pl.BlockSpec((1, c_out, n_tile), lambda bi, j: (bi, 0, j)),
        ),
        compiler_params=pltpu.CompilerParams(
            # Spatial axis parallel too: keeps both v7x TensorCores busy at small B.
            dimension_semantics=("parallel", "parallel"),
            vmem_limit_bytes=vmem_limit,
        ),
        cost_estimate=apply_cost,
    )(x_flat, weff, bias)

    # (B, C_out, N) -> NCHW: pure reshape.
    return out_flat.reshape(b, c_out, h, w)


def global_mixing_ref(x_nchw, w_qkv, w_out, b_out, *, heads, dim_head):
    """Pure-JAX transliteration of the PyTorch forward, for validation."""
    b, c, h, w = x_nchw.shape
    n = h * w
    qkv = jnp.einsum('oc,bchw->bohw', w_qkv, x_nchw)           # 1x1 conv, no bias
    qkv = qkv.reshape(b, 3, heads, dim_head, n)
    q, k, v = qkv[:, 0], qkv[:, 1], qkv[:, 2]                  # (b, heads, d, n)
    k = jax.nn.softmax(k, axis=-1)
    context = jnp.einsum('bhdn,bhen->bhde', k, v)
    out = jnp.einsum('bhde,bhdn->bhen', context, q)
    out = out.reshape(b, heads * dim_head, h, w)
    return jnp.einsum('oc,bchw->bohw', w_out, out) + b_out[None, :, None, None]


if __name__ == "__main__":
    # Small shapes consistent with the module; N = 256 -> two 128-lane spatial tiles
    # so the online-softmax accumulation path is actually exercised.
    B, DIM, H, W = 2, 8, 16, 16
    HEADS, DIM_HEAD = 4, 8
    HIDDEN = HEADS * DIM_HEAD

    key = jax.random.PRNGKey(0)
    kx, kq, kw, kb = jax.random.split(key, 4)
    x = jax.random.normal(kx, (B, DIM, H, W), dtype=jnp.float32)
    # 1x1-conv weights with kernel dims squeezed.
    w_qkv = 0.1 * jax.random.normal(kq, (3 * HIDDEN, DIM), dtype=jnp.float32)
    w_out = 0.1 * jax.random.normal(kw, (DIM, HIDDEN), dtype=jnp.float32)
    b_out = 0.1 * jax.random.normal(kb, (DIM,), dtype=jnp.float32)

    ref = global_mixing_ref(x, w_qkv, w_out, b_out, heads=HEADS, dim_head=DIM_HEAD)

    # f32 matmul-operand path (tight check; approx reciprocal contributes ~1e-3 rel).
    out_f32 = global_mixing_pallas(x, w_qkv, w_out, b_out, heads=HEADS,
                                   dim_head=DIM_HEAD, compute_dtype=jnp.float32,
                                   n_tile=128)
    out_f32 = jax.block_until_ready(out_f32)
    assert out_f32.shape == (B, DIM, H, W)
    assert out_f32.dtype == x.dtype
    assert jnp.allclose(out_f32, ref, atol=3e-3, rtol=3e-3), "f32 path mismatch"

    # bf16 MXU-operand path (default; f32 accumulation + f32 softmax statistics).
    out_bf16 = global_mixing_pallas(x, w_qkv, w_out, b_out, heads=HEADS,
                                    dim_head=DIM_HEAD, n_tile=128)
    out_bf16 = jax.block_until_ready(out_bf16)
    assert out_bf16.shape == (B, DIM, H, W)
    assert jnp.allclose(out_bf16, ref, atol=3e-2, rtol=3e-2), "bf16 path mismatch"

    print("KERNEL_OK")
</pallas_src>

<mosaic_0001>
module attributes {stable_mosaic.version = 11 : i64} {
  func.func @_context_kernel(%arg0: i32, %arg1: i32, %arg2: memref<1x8x128xf32, #tpu.memory_space<vmem>>, %arg3: memref<32x8xf32, #tpu.memory_space<vmem>>, %arg4: memref<32x8xf32, #tpu.memory_space<vmem>>, %arg5: memref<4x8x8xf32, #tpu.memory_space<vmem>>, %arg6: memref<4x8x8xf32, #tpu.memory_space<vmem>>, %arg7: memref<1x8x8xf32, #tpu.memory_space<vmem>>, %arg8: memref<32x1xf32, #tpu.memory_space<vmem>>, %arg9: memref<32x1xf32, #tpu.memory_space<vmem>>, %arg10: memref<4x8x8xf32, #tpu.memory_space<vmem>>) attributes {dimension_semantics = [#tpu.dimension_semantics<parallel>, #tpu.dimension_semantics<arbitrary>], iteration_bounds = array<i64: 2, 2>, scalar_prefetch = 0 : i64, scratch_operands = 3 : i64, tpu.core_type = #tpu.core_type<tc>, window_params = [{transform_indices = @transform_0, window_bounds = array<i64: 1, 8, 128>}, {pipeline_mode = #tpu.pipeline_mode<synchronous>, transform_indices = @transform_1, window_bounds = array<i64: 32, 8>}, {pipeline_mode = #tpu.pipeline_mode<synchronous>, transform_indices = @transform_2, window_bounds = array<i64: 32, 8>}, {pipeline_mode = #tpu.pipeline_mode<synchronous>, transform_indices = @transform_3, window_bounds = array<i64: 4, 8, 8>}, {pipeline_mode = #tpu.pipeline_mode<synchronous>, transform_indices = @transform_4, window_bounds = array<i64: 4, 8, 8>}, {transform_indices = @transform_5, window_bounds = array<i64: 1, 8, 8>}]} {
    %c0_i32 = arith.constant 0 : i32
    %0 = arith.cmpi eq, %arg1, %c0_i32 : i32
    %1 = arith.extui %0 : i1 to i32
    %c0_i32_0 = arith.constant 0 : i32
    %2 = arith.cmpi ne, %1, %c0_i32_0 : i32
    scf.if %2 {
      %cst_26 = arith.constant 0xFF800000 : f32
      %37 = vector.broadcast %cst_26 : f32 to vector<32x1xf32>
      %c0_27 = arith.constant 0 : index
      %c0_28 = arith.constant 0 : index
      %38 = vector.load %arg8[%c0_27, %c0_28] : memref<32x1xf32, #tpu.memory_space<vmem>>, vector<32x1xf32>
      tpu.vector_store %arg8[%c0_27, %c0_28], %37 {strides = array<i32>} : memref<32x1xf32, #tpu.memory_space<vmem>>, vector<32x1xf32>,
      %cst_29 = arith.constant 0.000000e+00 : f32
      %39 = vector.broadcast %cst_29 : f32 to vector<32x1xf32>
      %c0_30 = arith.constant 0 : index
      %c0_31 = arith.constant 0 : index
      %40 = vector.load %arg9[%c0_30, %c0_31] : memref<32x1xf32, #tpu.memory_space<vmem>>, vector<32x1xf32>
      tpu.vector_store %arg9[%c0_30, %c0_31], %39 {strides = array<i32>} : memref<32x1xf32, #tpu.memory_space<vmem>>, vector<32x1xf32>,
      %cst_32 = arith.constant 0.000000e+00 : f32
      %41 = vector.broadcast %cst_32 : f32 to vector<4x8x8xf32>
      %c0_33 = arith.constant 0 : index
      %c0_34 = arith.constant 0 : index
      %c0_35 = arith.constant 0 : index
      %42 = vector.load %arg10[%c0_33, %c0_34, %c0_35] : memref<4x8x8xf32, #tpu.memory_space<vmem>>, vector<4x8x8xf32>
      tpu.vector_store %arg10[%c0_33, %c0_34, %c0_35], %41 {strides = array<i32>} : memref<4x8x8xf32, #tpu.memory_space<vmem>>, vector<4x8x8xf32>,
    } else {
    }
    %c0 = arith.constant 0 : index
    %c0_1 = arith.constant 0 : index
    %c0_2 = arith.constant 0 : index
    %3 = vector.load %arg2[%c0, %c0_1, %c0_2] : memref<1x8x128xf32, #tpu.memory_space<vmem>>, vector<1x8x128xf32>
    %4 = vector.shape_cast %3 : vector<1x8x128xf32> to vector<8x128xf32>
    %c0_3 = arith.constant 0 : index
    %c0_4 = arith.constant 0 : index
    %5 = vector.load %arg3[%c0_3, %c0_4] : memref<32x8xf32, #tpu.memory_space<vmem>>, vector<32x8xf32>
    %cst = arith.constant dense<0.000000e+00> : vector<32x128xf32>
    %6 = tpu.matmul %5, %4, %cst {dimension_numbers = #tpu.dot_dimension_numbers<[1], [0], [0], [1], [0, 0, 1, 1], [], []>} : vector<32x8xf32>, vector<8x128xf32>, vector<32x128xf32> -> vector<32x128xf32>
    %c0_5 = arith.constant 0 : index
    %c0_6 = arith.constant 0 : index
    %7 = vector.load %arg4[%c0_5, %c0_6] : memref<32x8xf32, #tpu.memory_space<vmem>>, vector<32x8xf32>
    %cst_7 = arith.constant dense<0.000000e+00> : vector<32x128xf32>
    %8 = tpu.matmul %7, %4, %cst_7 {dimension_numbers = #tpu.dot_dimension_numbers<[1], [0], [0], [1], [0, 0, 1, 1], [], []>} : vector<32x8xf32>, vector<8x128xf32>, vector<32x128xf32> -> vector<32x128xf32>
    %c0_8 = arith.constant 0 : index
    %c0_9 = arith.constant 0 : index
    %9 = vector.load %arg8[%c0_8, %c0_9] : memref<32x1xf32, #tpu.memory_space<vmem>>, vector<32x1xf32>
    %cst_10 = arith.constant dense<0xFF800000> : vector<32xf32>
    %10 = vector.multi_reduction <maximumf>, %6, %cst_10 [1] : vector<32x128xf32> to vector<32xf32>
    %11 = vector.shape_cast %10 : vector<32xf32> to vector<32x1xf32>
    %12 = arith.maximumf %9, %11 : vector<32x1xf32>
    %13 = arith.subf %9, %12 : vector<32x1xf32>
    %14 = math.exp %13 : vector<32x1xf32>
    %15 = vector.broadcast %12 : vector<32x1xf32> to vector<32x128xf32>
    %16 = arith.subf %6, %15 : vector<32x128xf32>
    %17 = math.exp %16 : vector<32x128xf32>
    %c0_11 = arith.constant 0 : index
    %c0_12 = arith.constant 0 : index
    %18 = vector.load %arg9[%c0_11, %c0_12] : memref<32x1xf32, #tpu.memory_space<vmem>>, vector<32x1xf32>
    %19 = arith.mulf %14, %18 : vector<32x1xf32>
    %cst_13 = arith.constant dense<0.000000e+00> : vector<32xf32>
    %20 = vector.multi_reduction <add>, %17, %cst_13 [1] : vector<32x128xf32> to vector<32xf32>
    %21 = vector.shape_cast %20 : vector<32xf32> to vector<32x1xf32>
    %22 = arith.addf %19, %21 : vector<32x1xf32>
    %c0_14 = arith.constant 0 : index
    %c0_15 = arith.constant 0 : index
    %23 = vector.load %arg9[%c0_14, %c0_15] : memref<32x1xf32, #tpu.memory_space<vmem>>, vector<32x1xf32>
    tpu.vector_store %arg9[%c0_14, %c0_15], %22 {strides = array<i32>} : memref<32x1xf32, #tpu.memory_space<vmem>>, vector<32x1xf32>,
    %24 = vector.shape_cast %17 : vector<32x128xf32> to vector<4x8x128xf32>
    %25 = vector.shape_cast %8 : vector<32x128xf32> to vector<4x8x128xf32>
    "tpu.trace_start"() <{level = 10 : i32, message = "hdn,hen->hde"}> : () -> ()
    %cst_16 = arith.constant dense<0.000000e+00> : vector<4x8x8xf32>
    %26 = tpu.matmul %24, %25, %cst_16 {dimension_numbers = #tpu.dot_dimension_numbers<[2], [2], [1], [1], [0, 0, 0, 1, 1, 1], [0], [0]>} : vector<4x8x128xf32>, vector<4x8x128xf32>, vector<4x8x8xf32> -> vector<4x8x8xf32>
    "tpu.trace_stop"() : () -> ()
    %27 = vector.shape_cast %14 : vector<32x1xf32> to vector<4x8x1xf32>
    %c0_17 = arith.constant 0 : index
    %c0_18 = arith.constant 0 : index
    %c0_19 = arith.constant 0 : index
    %28 = vector.load %arg10[%c0_17, %c0_18, %c0_19] : memref<4x8x8xf32, #tpu.memory_space<vmem>>, vector<4x8x8xf32>
    %29 = vector.broadcast %27 : vector<4x8x1xf32> to vector<4x8x8xf32>
    %30 = arith.mulf %29, %28 : vector<4x8x8xf32>
    %31 = arith.addf %30, %26 : vector<4x8x8xf32>
    %c0_20 = arith.constant 0 : index
    %c0_21 = arith.constant 0 : index
    %c0_22 = arith.constant 0 : index
    %32 = vector.load %arg10[%c0_20, %c0_21, %c0_22] : memref<4x8x8xf32, #tpu.memory_space<vmem>>, vector<4x8x8xf32>
    tpu.vector_store %arg10[%c0_20, %c0_21, %c0_22], %31 {strides = array<i32>} : memref<4x8x8xf32, #tpu.memory_space<vmem>>, vector<4x8x8xf32>,
    %c0_23 = arith.constant 0 : index
    %c0_24 = arith.constant 0 : index
    %33 = vector.load %arg8[%c0_23, %c0_24] : memref<32x1xf32, #tpu.memory_space<vmem>>, vector<32x1xf32>
    tpu.vector_store %arg8[%c0_23, %c0_24], %12 {strides = array<i32>} : memref<32x1xf32, #tpu.memory_space<vmem>>, vector<32x1xf32>,
    %c1_i32 = arith.constant 1 : i32
    %34 = arith.cmpi eq, %arg1, %c1_i32 : i32
    %35 = arith.extui %34 : i1 to i32
    %c0_i32_25 = arith.constant 0 : i32
    %36 = arith.cmpi ne, %35, %c0_i32_25 : i32
    scf.if %36 {
      %c0_26 = arith.constant 0 : index
      %c0_27 = arith.constant 0 : index
      %37 = vector.load %arg9[%c0_26, %c0_27] : memref<32x1xf32, #tpu.memory_space<vmem>>, vector<32x1xf32>
      %38 = tpu.reciprocal %37 {approx = true} : vector<32x1xf32> -> vector<32x1xf32>
      %c0_28 = arith.constant 0 : index
      %c0_29 = arith.constant 0 : index
      %c0_30 = arith.constant 0 : index
      %39 = vector.load %arg10[%c0_28, %c0_29, %c0_30] : memref<4x8x8xf32, #tpu.memory_space<vmem>>, vector<4x8x8xf32>
      %40 = vector.shape_cast %38 : vector<32x1xf32> to vector<4x8x1xf32>
      %41 = vector.broadcast %40 : vector<4x8x1xf32> to vector<4x8x8xf32>
      %42 = arith.mulf %39, %41 : vector<4x8x8xf32>
      %c0_31 = arith.constant 0 : index
      %c0_32 = arith.constant 0 : index
      %c0_33 = arith.constant 0 : index
      %43 = vector.load %arg6[%c0_31, %c0_32, %c0_33] : memref<4x8x8xf32, #tpu.memory_space<vmem>>, vector<4x8x8xf32>
      "tpu.trace_start"() <{level = 10 : i32, message = "hce,hde->hcd"}> : () -> ()
      %cst_34 = arith.constant dense<0.000000e+00> : vector<4x8x8xf32>
      %44 = tpu.matmul %43, %42, %cst_34 {dimension_numbers = #tpu.dot_dimension_numbers<[2], [2], [1], [1], [0, 0, 0, 1, 1, 1], [0], [0]>} : vector<4x8x8xf32>, vector<4x8x8xf32>, vector<4x8x8xf32> -> vector<4x8x8xf32>
      "tpu.trace_stop"() : () -> ()
      %c0_35 = arith.constant 0 : index
      %c0_36 = arith.constant 0 : index
      %c0_37 = arith.constant 0 : index
      %45 = vector.load %arg5[%c0_35, %c0_36, %c0_37] : memref<4x8x8xf32, #tpu.memory_space<vmem>>, vector<4x8x8xf32>
      "tpu.trace_start"() <{level = 10 : i32, message = "hcd,hdk->hck"}> : () -> ()
      %cst_38 = arith.constant dense<0.000000e+00> : vector<4x8x8xf32>
      %46 = tpu.matmul %44, %45, %cst_38 {dimension_numbers = #tpu.dot_dimension_numbers<[2], [1], [1], [2], [0, 0, 0, 1, 1, 2], [0], [0]>} : vector<4x8x8xf32>, vector<4x8x8xf32>, vector<4x8x8xf32> -> vector<4x8x8xf32>
      "tpu.trace_stop"() : () -> ()
      %cst_39 = arith.constant dense<0.000000e+00> : vector<8x8xf32>
      %47 = vector.multi_reduction <add>, %46, %cst_39 [0] : vector<4x8x8xf32> to vector<8x8xf32>
      %c0_40 = arith.constant 0 : index
      %c0_41 = arith.constant 0 : index
      %c0_42 = arith.constant 0 : index
      %48 = vector.load %arg7[%c0_40, %c0_41, %c0_42] : memref<1x8x8xf32, #tpu.memory_space<vmem>>, vector<1x8x8xf32>
      %49 = vector.shape_cast %48 : vector<1x8x8xf32> to vector<8x8xf32>
      %50 = vector.shape_cast %47 : vector<8x8xf32> to vector<1x8x8xf32>
      tpu.vector_store %arg7[%c0_40, %c0_41, %c0_42], %50 {strides = array<i32>} : memref<1x8x8xf32, #tpu.memory_space<vmem>>, vector<1x8x8xf32>,
    } else {
    }
    return
  }
  func.func @transform_0(%arg0: i32, %arg1: i32) -> (i32, i32, i32) {
    %c0_i32 = arith.constant 0 : i32
    %c0_i32_0 = arith.constant 0 : i32
    return %arg0, %c0_i32, %arg1 : i32, i32, i32
  }
  func.func @transform_1(%arg0: i32, %arg1: i32) -> (i32, i32) {
    %c0_i32 = arith.constant 0 : i32
    %c0_i32_0 = arith.constant 0 : i32
    %c0_i32_1 = arith.constant 0 : i32
    return %c0_i32, %c0_i32_0 : i32, i32
  }
  func.func @transform_2(%arg0: i32, %arg1: i32) -> (i32, i32) {
    %c0_i32 = arith.constant 0 : i32
    %c0_i32_0 = arith.constant 0 : i32
    %c0_i32_1 = arith.constant 0 : i32
    return %c0_i32, %c0_i32_0 : i32, i32
  }
  func.func @transform_3(%arg0: i32, %arg1: i32) -> (i32, i32, i32) {
    %c0_i32 = arith.constant 0 : i32
    %c0_i32_0 = arith.constant 0 : i32
    %c0_i32_1 = arith.constant 0 : i32
    %c0_i32_2 = arith.constant 0 : i32
    return %c0_i32, %c0_i32_0, %c0_i32_1 : i32, i32, i32
  }
  func.func @transform_4(%arg0: i32, %arg1: i32) -> (i32, i32, i32) {
    %c0_i32 = arith.constant 0 : i32
    %c0_i32_0 = arith.constant 0 : i32
    %c0_i32_1 = arith.constant 0 : i32
    %c0_i32_2 = arith.constant 0 : i32
    return %c0_i32, %c0_i32_0, %c0_i32_1 : i32, i32, i32
  }
  func.func @transform_5(%arg0: i32, %arg1: i32) -> (i32, i32, i32) {
    %c0_i32 = arith.constant 0 : i32
    %c0_i32_0 = arith.constant 0 : i32
    %c0_i32_1 = arith.constant 0 : i32
    return %arg0, %c0_i32, %c0_i32_0 : i32, i32, i32
  }
}

</mosaic_0001>

<llo_original>
// kernel: tpu_custom_call.1
$region0: #{tpu_custom_call.1}
  #allocation0 [shape = 'u32[]', space=smem, size = 0x4, offset = 0x4, fixed_abs, tag = 'smem constant byte address 0x4 - core index']
  #allocation1 [shape = 'u32[144,128]{1,0:T(1,128)}', space=vmem, size = 0x12000, scoped, tag = 'internal scratch']
  #allocation2 [shape = 'f32[32,1]{1,0:T(8,128)}', space=vmem, size = 0x4000, scoped, tag = 'scratch operand']
  #allocation3 [shape = 'f32[32,1]{1,0:T(8,128)}', space=vmem, size = 0x4000, scoped, tag = 'scratch operand']
  #allocation4 [shape = 'f32[4,8,8]{2,1,0:T(8,128)}', space=vmem, size = 0x4000, scoped, tag = 'scratch operand']
  %s0 = inlined_call_operand.vmem [shape: f32[2,8,256], index: 0, kind: input, shape index: {}]
  %s1 = inlined_call_operand.vmem [shape: f32[32,8], index: 1, kind: input, shape index: {}]
  %s2 = inlined_call_operand.vmem [shape: f32[32,8], index: 2, kind: input, shape index: {}]
  %s3 = inlined_call_operand.vmem [shape: f32[4,8,8], index: 3, kind: input, shape index: {}]
  %s4 = inlined_call_operand.hbm [shape: f32[4,8,8], index: 4, kind: input, shape index: {}]
  %s5 = inlined_call_operand.hbm [shape: f32[2,8,8], index: 5, kind: output, shape index: {}]
  %s6 = sld [smem:[#allocation0]]
  $region65: #{tpu_custom_call.1} parent=0
    _
  %s8 = ssub.s32 1, %s6
  %s9 = scalar_select 0, %s8, %s6
  $region1: #{tpu_custom_call.1} parent=0
    #allocation5 [shape = 'u8[16384]{0}', space=vmem, size = 0x4000, scoped, tag = 'input window, operand 4, single buffered']
    #allocation6 [shape = 's32[2]{0}', space=sflag, size = 0x8, scoped, tag = 'scoped memory for tpu_custom_call.1']
    #allocation7 [shape = 's32[2]{0}', space=sflag, size = 0x8, scoped, tag = 'scoped memory for tpu_custom_call.1']
    #allocation8 [shape = 'u8[8192]{0}', space=vmem, size = 0x2000, scoped, tag = 'output window, operand 0']
    %10 = vsyncpa [#allocation6], 0
    %11 = vsyncpa [#allocation7], 0
    %s12 = scalar_lea.sflag [#allocation7], 1
    %13 = vsyncpa %s12, 0
    loop: start=0, step=1, limit=6
    $region2: #{tpu_custom_call.1} parent=1 // loop_pre_header
      _
    $region3: #{tpu_custom_call.1} parent=1 // loop_header
      %s15 = sphi 0, %s19
      %p16 = scmp.ge.s32.totalorder %s15, 6
      %s22 = sphi 0, %s34
      %s23 = sphi 0, %s30
      %s24 = sphi 0, %s22
      %s25 = sphi 0, %s23
      %s26 = sphi 0, %s24
      %s27 = sphi 0, %s25
      %s39 = sphi 0, %s41
      %s42 = sphi 0, %s39
      %s43 = sphi 0, %s42
      %s59 = sphi 0, %s43
      %s63 = sphi 0, %s63
      %s65 = sphi 0, %s63
      %s66 = sphi 0, %s65
      %s80 = sphi 0, %s66
      %s84 = sphi 0, %s84
      %s86 = sphi 0, %s84
      %s87 = sphi 0, %s86
      %s101 = sphi 0, %s87
      %s105 = sphi 0, %s105
      %s107 = sphi 0, %s105
      %s108 = sphi 0, %s107
      %s122 = sphi 0, %s108
      %s126 = sphi 0, %s126
      %s128 = sphi 0, %s126
      %s129 = sphi 0, %s128
      %s143 = sphi 0, %s129
      %s149 = sphi 0, %s151
      %s152 = sphi 0, %s149
      %s153 = sphi 0, %s152
      %s169 = sphi 0, %s153
    $region4: #{tpu_custom_call.1} parent=1 // loop_header_branch
      %18 = sbr.rel (%p16) target = $region8
    $region5: #{tpu_custom_call.1} parent=1 // loop_body
      %s20 = ssub.s32 %s15, 1
      %s21 = ssub.s32 %s15, 2
      %s28 = sadd.s32 1, %s23
      %p29 = scmp.ge.s32.totalorder %s28, 2
      %s30 = scalar_select %p29, 0, %s28
      %s31 = sadd.s32 1, %s22
      %s32 = scalar_select %p29, %s31, %s22
      %p33 = scmp.ge.s32.totalorder %s32, 2
      %s34 = scalar_select %p33, 0, %s32
      %s35 = ssub.s32 %s22, %s34
      %s36 = ssub.s32 %s23, %s30
      %s37 = sor.u32 %s35, %s36
      %p38 = scmp.eq.s32.totalorder %s37, 0
      %s40 = sadd.s32 %s39, 1
      %s41 = scalar_select %p38, %s39, %s40
      %p44 = pneg %p38
      %p45 = scmp.eq.s32.totalorder %s15, 3
      %p46 = por %p44, %p45
      %p47 = scmp.ne.s32.totalorder %s39, %s42
      %p48 = scmp.eq.s32.totalorder %s15, 0
      %p49 = por %p47, %p48
      %p50 = scmp.ne.s32.totalorder %s39, %s42
      %p51 = scmp.eq.s32.totalorder %s20, 3
      %p52 = por %p50, %p51
      %p53 = scmp.ne.s32.totalorder %s42, %s43
      %p54 = scmp.eq.s32.totalorder %s20, 0
      %p55 = por %p53, %p54
      %p56 = scmp.ne.s32.totalorder %s42, %s43
      %p57 = scmp.eq.s32.totalorder %s21, 3
      %p58 = por %p56, %p57
      %p60 = scmp.ne.s32.totalorder %s43, %s59
      %p61 = scmp.eq.s32.totalorder %s21, 0
      %p62 = por %p60, %p61
      %s64 = sadd.s32 %s63, 1
      %p67 = scmp.eq.s32.totalorder %s15, 3
      %p68 = scmp.ne.s32.totalorder %s63, %s65
      %p69 = scmp.eq.s32.totalorder %s15, 0
      %p70 = por %p68, %p69
      %p71 = scmp.ne.s32.totalorder %s63, %s65
      %p72 = scmp.eq.s32.totalorder %s20, 3
      %p73 = por %p71, %p72
      %p74 = scmp.ne.s32.totalorder %s65, %s66
      %p75 = scmp.eq.s32.totalorder %s20, 0
      %p76 = por %p74, %p75
      %p77 = scmp.ne.s32.totalorder %s65, %s66
      %p78 = scmp.eq.s32.totalorder %s21, 3
      %p79 = por %p77, %p78
      %p81 = scmp.ne.s32.totalorder %s66, %s80
      %p82 = scmp.eq.s32.totalorder %s21, 0
      %p83 = por %p81, %p82
      %s85 = sadd.s32 %s84, 1
      %p88 = scmp.eq.s32.totalorder %s15, 3
      %p89 = scmp.ne.s32.totalorder %s84, %s86
      %p90 = scmp.eq.s32.totalorder %s15, 0
      %p91 = por %p89, %p90
      %p92 = scmp.ne.s32.totalorder %s84, %s86
      %p93 = scmp.eq.s32.totalorder %s20, 3
      %p94 = por %p92, %p93
      %p95 = scmp.ne.s32.totalorder %s86, %s87
      %p96 = scmp.eq.s32.totalorder %s20, 0
      %p97 = por %p95, %p96
      %p98 = scmp.ne.s32.totalorder %s86, %s87
      %p99 = scmp.eq.s32.totalorder %s21, 3
      %p100 = por %p98, %p99
      %p102 = scmp.ne.s32.totalorder %s87, %s101
      %p103 = scmp.eq.s32.totalorder %s21, 0
      %p104 = por %p102, %p103
      %s106 = sadd.s32 %s105, 1
      %p109 = scmp.eq.s32.totalorder %s15, 3
      %p110 = scmp.ne.s32.totalorder %s105, %s107
      %p111 = scmp.eq.s32.totalorder %s15, 0
      %p112 = por %p110, %p111
      %p113 = scmp.ne.s32.totalorder %s105, %s107
      %p114 = scmp.eq.s32.totalorder %s20, 3
      %p115 = por %p113, %p114
      %p116 = scmp.ne.s32.totalorder %s107, %s108
      %p117 = scmp.eq.s32.totalorder %s20, 0
      %p118 = por %p116, %p117
      %p119 = scmp.ne.s32.totalorder %s107, %s108
      %p120 = scmp.eq.s32.totalorder %s21, 3
      %p121 = por %p119, %p120
      %p123 = scmp.ne.s32.totalorder %s108, %s122
      %p124 = scmp.eq.s32.totalorder %s21, 0
      %p125 = por %p123, %p124
      %s127 = sadd.s32 %s126, 1
      %p130 = scmp.eq.s32.totalorder %s15, 3
      %p131 = scmp.ne.s32.totalorder %s126, %s128
      %p132 = scmp.eq.s32.totalorder %s15, 0
      %p133 = por %p131, %p132
      %p134 = scmp.ne.s32.totalorder %s126, %s128
      %p135 = scmp.eq.s32.totalorder %s20, 3
      %p136 = por %p134, %p135
      %p137 = scmp.ne.s32.totalorder %s128, %s129
      %p138 = scmp.eq.s32.totalorder %s20, 0
      %p139 = por %p137, %p138
      %p140 = scmp.ne.s32.totalorder %s128, %s129
      %p141 = scmp.eq.s32.totalorder %s21, 3
      %p142 = por %p140, %p141
      %p144 = scmp.ne.s32.totalorder %s129, %s143
      %p145 = scmp.eq.s32.totalorder %s21, 0
      %p146 = por %p144, %p145
      %s147 = ssub.s32 %s22, %s34
      %p148 = scmp.eq.s32.totalorder %s147, 0
      %s150 = sadd.s32 %s149, 1
      %s151 = scalar_select %p148, %s149, %s150
      %p154 = pneg %p148
      %p155 = scmp.eq.s32.totalorder %s15, 3
      %p156 = por %p154, %p155
      %p157 = scmp.ne.s32.totalorder %s149, %s152
      %p158 = scmp.eq.s32.totalorder %s15, 0
      %p159 = por %p157, %p158
      %p160 = scmp.ne.s32.totalorder %s149, %s152
      %p161 = scmp.eq.s32.totalorder %s20, 3
      %p162 = por %p160, %p161
      %p163 = scmp.ne.s32.totalorder %s152, %s153
      %p164 = scmp.eq.s32.totalorder %s20, 0
      %p165 = por %p163, %p164
      %p166 = scmp.ne.s32.totalorder %s152, %s153
      %p167 = scmp.eq.s32.totalorder %s21, 3
      %p168 = por %p166, %p167
      %p170 = scmp.ne.s32.totalorder %s153, %s169
      %p171 = scmp.eq.s32.totalorder %s21, 0
      %p172 = por %p170, %p171
      %p173 = scmp.le.s32.totalorder 1, %s15
      %p174 = scmp.lt.s32.totalorder %s15, 5
      %p175 = pnand %p173, %p174
      %p176 = pneg %p175
      // Predicated region
      $region9: #{tpu_custom_call.1} parent=5 // pred_check
        _
      $region10: #{tpu_custom_call.1} parent=5 // pred_check_branch
        %178 = sbr.rel (%p175) target = $region12
      $region11: #{tpu_custom_call.1} parent=5 // pred_region
        %s179 = ssub.s32 %s15, 1
        // Predicated region
        $region13: #{tpu_custom_call.1} parent=11 // pred_check
          %p180 = pneg %p76
        $region14: #{tpu_custom_call.1} parent=11 // pred_check_branch
          %182 = sbr.rel (%p180) target = $region16
        $region15: #{tpu_custom_call.1} parent=11 // pred_region
          _
        $region16: #{tpu_custom_call.1} parent=11 // pred_fallthru
          _
        // Predicated region
        $region17: #{tpu_custom_call.1} parent=11 // pred_check
          %p183 = pneg %p97
        $region18: #{tpu_custom_call.1} parent=11 // pred_check_branch
          %185 = sbr.rel (%p183) target = $region20
        $region19: #{tpu_custom_call.1} parent=11 // pred_region
          _
        $region20: #{tpu_custom_call.1} parent=11 // pred_fallthru
          _
        // Predicated region
        $region21: #{tpu_custom_call.1} parent=11 // pred_check
          %p186 = pneg %p118
        $region22: #{tpu_custom_call.1} parent=11 // pred_check_branch
          %188 = sbr.rel (%p186) target = $region24
        $region23: #{tpu_custom_call.1} parent=11 // pred_region
          _
        $region24: #{tpu_custom_call.1} parent=11 // pred_fallthru
          _
        // Predicated region
        $region25: #{tpu_custom_call.1} parent=11 // pred_check
          %p189 = pneg %p139
        $region26: #{tpu_custom_call.1} parent=11 // pred_check_branch
          %191 = sbr.rel (%p189) target = $region28
        $region27: #{tpu_custom_call.1} parent=11 // pred_region
          %s193 = ssub.s32 512, 512
          %194 = vsyncadd [#allocation6], %s193
          %s195 = sshll.u32 [#allocation5], 4
          %s196 = int_to_ptr.vmem [resolvable:$true] %s195
          %201 = dma.hbm_to_vmem [thread:$0]  %s4, 512, %s196, [#allocation6], 128, 128, 8
        $region28: #{tpu_custom_call.1} parent=11 // pred_fallthru
          _
      $region12: #{tpu_custom_call.1} parent=5 // pred_fallthru
        _
      %p202 = scmp.lt.s32.totalorder %s15, 4
      // Predicated region
      $region29: #{tpu_custom_call.1} parent=5 // pred_check
        %p203 = pneg %p202
      $region30: #{tpu_custom_call.1} parent=5 // pred_check_branch
        %205 = sbr.rel (%p203) target = $region32
      $region31: #{tpu_custom_call.1} parent=5 // pred_region
        // Predicated region
        $region33: #{tpu_custom_call.1} parent=31 // pred_check
          %p206 = pneg %p49
        $region34: #{tpu_custom_call.1} parent=31 // pred_check_branch
          %208 = sbr.rel (%p206) target = $region36
        $region35: #{tpu_custom_call.1} parent=31 // pred_region
          %p209 = scmp.lt.s32.totalorder %s22, 1
          %s210 = scalar_select %p209, %s22, 1
          %p211 = scmp.lt.s32.totalorder %s23, 1
          %s212 = scalar_select %p211, %s23, 1
          %s213 = smul.addr %s210, 2
          %s214 = sadd.s32 %s212, %s213
          %s215 = smul.addr %s214, 8
          %s216 = scalar_lea.vmem %s0, %s215
        $region36: #{tpu_custom_call.1} parent=31 // pred_fallthru
          _
      $region32: #{tpu_custom_call.1} parent=5 // pred_fallthru
        _
      %p217 = scmp.le.s32.totalorder 1, %s15
      %p218 = scmp.lt.s32.totalorder %s15, 5
      %p219 = pnand %p217, %p218
      %p220 = pneg %p219
      // Predicated region
      $region37: #{tpu_custom_call.1} parent=5 // pred_check
        _
      $region38: #{tpu_custom_call.1} parent=5 // pred_check_branch
        %222 = sbr.rel (%p219) target = $region40
      $region39: #{tpu_custom_call.1} parent=5 // pred_region
        %s223 = ssub.s32 %s15, 1
        // Predicated region
        $region41: #{tpu_custom_call.1} parent=39 // pred_check
          %p224 = pneg %p139
        $region42: #{tpu_custom_call.1} parent=39 // pred_check_branch
          %226 = sbr.rel (%p224) target = $region44
        $region43: #{tpu_custom_call.1} parent=39 // pred_region
          %227 = dma.done [#allocation6], 512
        $region44: #{tpu_custom_call.1} parent=39 // pred_fallthru
          _
        %p228 = scmp.lt.s32.totalorder %s24, 1
        %s229 = scalar_select %p228, %s24, 1
        %p230 = scmp.lt.s32.totalorder %s25, 1
        %s231 = scalar_select %p230, %s25, 1
        %s232 = smul.addr %s229, 2
        %s233 = sadd.s32 %s231, %s232
        %s234 = smul.addr %s233, 8
        %s235 = scalar_lea.vmem %s0, %s234
        %p236 = pneg %p55
        %p237 = pneg %p52
        %p238 = pneg %p76
        %p239 = pneg %p73
        %p240 = pneg %p97
        %p241 = pneg %p94
        %p242 = pneg %p118
        %p243 = pneg %p115
        %p244 = pneg %p139
        %p245 = pneg %p136
        %p246 = pneg %p165
        %p247 = pneg %p162
        %s248 = sand.u32 %s152, 1
        %s249 = scalar_lea.sflag [#allocation7], %s248
        %s250 = sand.u32 %s152, 1
        %s251 = smul.addr %s250, 8
        %s252 = scalar_lea.vmem [#allocation8], %s251
        %p253 = scmp.lt.s32.totalorder %s24, 1
        %s254 = scalar_select %p253, %s24, 1
        %p255 = scmp.lt.s32.totalorder %s25, 1
        %s256 = scalar_select %p255, %s25, 1
        %s257 = smul.addr %s254, 2
        %s258 = sadd.s32 %s256, %s257
        %s259 = smul.addr %s258, 8
        %s260 = scalar_lea.vmem %s0, %s259
        %p261 = scmp.eq.s32.totalorder %s25, 0
        // Predicated region
        $region45: #{tpu_custom_call.1} parent=39 // pred_check
          %p262 = pneg %p261
        $region46: #{tpu_custom_call.1} parent=39 // pred_check_branch
          %264 = sbr.rel (%p262) target = $region48
        $region47: #{tpu_custom_call.1} parent=39 // pred_region
          %vm265 = vcmask 7168
          %266 = vst.msk [vmem:[#allocation2] sm:$0xff] %vm265, -inf
          %267 = vst.msk [vmem:[#allocation2 + $0x8] sm:$0xff] %vm265, -inf
          %268 = vst.msk [vmem:[#allocation2 + $0x10] sm:$0xff] %vm265, -inf
          %269 = vst.msk [vmem:[#allocation2 + $0x18] sm:$0xff] %vm265, -inf
          %270 = vst.msk [vmem:[#allocation3] sm:$0xff] %vm265, 0.0
          %271 = vst.msk [vmem:[#allocation3 + $0x8] sm:$0xff] %vm265, 0.0
          %272 = vst.msk [vmem:[#allocation3 + $0x10] sm:$0xff] %vm265, 0.0
          %273 = vst.msk [vmem:[#allocation3 + $0x18] sm:$0xff] %vm265, 0.0
          %vm274 = vcmask 64512
          %275 = vst.msk [vmem:[#allocation4] sm:$0xff] %vm274, 0.0
          %276 = vst.msk [vmem:[#allocation4 + $0x8] sm:$0xff] %vm274, 0.0
          %277 = vst.msk [vmem:[#allocation4 + $0x10] sm:$0xff] %vm274, 0.0
          %278 = vst.msk [vmem:[#allocation4 + $0x18] sm:$0xff] %vm274, 0.0
        $region48: #{tpu_custom_call.1} parent=39 // pred_fallthru
          _
        %v279 = vld [vmem:[%s260] sm:$0xff]
        %v280 = vld [vmem:[%s1] sm:$0xff]
        %v281 = vld [vmem:[%s1 + $0x8] sm:$0xff]
        %v282 = vld [vmem:[%s1 + $0x10] sm:$0xff]
        %v283 = vld [vmem:[%s1 + $0x18] sm:$0xff]
        %vm284 = vcmask 64512
        %v286 = vsel %vm284, %v280, 0
        %v289 = vsel %vm284, %v281, 0
        %v292 = vsel %vm284, %v282, 0
        %v295 = vsel %vm284, %v283, 0
        %297 = vmatprep.subr.mxu0 0.0
        %298 = vmatpush1.msra.mxu0 %v279
        %299 = vmatprep.subr.mxu0 0.0
        %300 = vmatpush1.msra.mxu0 0.0
        %301 = vmatprep.subr.mxu0 0.0
        %302 = vmatpush1.msra.mxu0 0.0
        %303 = vmatprep.subr.mxu0 0.0
        %304 = vmatpush1.msra.mxu0 0.0
        %305 = vmatprep.subr.mxu0 0.0
        %306 = vmatpush1.msra.mxu0 0.0
        %307 = vmatprep.subr.mxu0 0.0
        %308 = vmatpush1.msra.mxu0 0.0
        %309 = vmatprep.subr.mxu0 0.0
        %310 = vmatpush1.msra.mxu0 0.0
        %311 = vmatprep.subr.mxu0 0.0
        %312 = vmatpush1.msra.mxu0 0.0
        %313 = vmatprep.subr.mxu0 0.0
        %314 = vmatpush1.msra.mxu0 0.0
        %315 = vmatprep.subr.mxu0 0.0
        %316 = vmatpush1.msra.mxu0 0.0
        %317 = vmatprep.subr.mxu0 0.0
        %318 = vmatpush1.msra.mxu0 0.0
        %319 = vmatprep.subr.mxu0 0.0
        %320 = vmatpush1.msra.mxu0 0.0
        %321 = vmatprep.subr.mxu0 0.0
        %322 = vmatpush1.msra.mxu0 0.0
        %323 = vmatprep.subr.mxu0 0.0
        %324 = vmatpush1.msra.mxu0 0.0
        %325 = vmatprep.subr.mxu0 0.0
        %326 = vmatpush1.msra.mxu0 0.0
        %327 = vmatprep.subr.mxu0 0.0
        %328 = vmatpush1.msra.mxu0 0.0
        %329 = vmatprep.subr.mxu0 0.0
        %330 = vmatpush1.msra.mxu0 0.0
        %331 = vmatprep.subr.mxu0 0.0
        %332 = vmatpush1.msra.mxu0 0.0
        %333 = vmatprep.subr.mxu0 0.0
        %334 = vmatpush1.msra.mxu0 0.0
        %335 = vmatprep.subr.mxu0 0.0
        %336 = vmatpush1.msra.mxu0 0.0
        %337 = vmatprep.subr.mxu0 0.0
        %338 = vmatpush1.msra.mxu0 0.0
        %339 = vmatprep.subr.mxu0 0.0
        %340 = vmatpush1.msra.mxu0 0.0
        %341 = vmatprep.subr.mxu0 0.0
        %342 = vmatpush1.msra.mxu0 0.0
        %343 = vmatprep.subr.mxu0 0.0
        %344 = vmatpush1.msra.mxu0 0.0
        %345 = vmatprep.subr.mxu0 0.0
        %346 = vmatpush1.msra.mxu0 0.0
        %347 = vmatprep.subr.mxu0 0.0
        %348 = vmatpush1.msra.mxu0 0.0
        %349 = vmatprep.subr.mxu0 0.0
        %350 = vmatpush1.msra.mxu0 0.0
        %351 = vmatprep.subr.mxu0 0.0
        %352 = vmatpush1.msra.mxu0 0.0
        %353 = vmatprep.subr.mxu0 0.0
        %354 = vmatpush1.msra.mxu0 0.0
        %355 = vmatprep.subr.mxu0 0.0
        %356 = vmatpush1.msra.mxu0 0.0
        %357 = vmatprep.subr.mxu0 0.0
        %358 = vmatpush1.msra.mxu0 0.0
        %359 = vmatprep.subr.mxu0 0.0
        %360 = vmatpush1.msra.mxu0 0.0
        %361 = vmatprep.mubr.f32.mxu0 0.0
        %362 = vmatmul.mubr.f32.gmra.mrb[0].mxu0 %v286
        %v363 = vpop.f32.mrb[0].mxu0
        %v364 = vadd.f32 0.0, %v363
        %v365 = vpop.f32.mrb[0].mxu0
        %366 = vmatprep.mubr.f32.mxu0 0.0
        %367 = vmatmul.mubr.f32.gmra.mrb[0].mxu0 %v289
        %v368 = vpop.f32.mrb[0].mxu0
        %v369 = vadd.f32 0.0, %v368
        %v370 = vpop.f32.mrb[0].mxu0
        %371 = vmatprep.mubr.f32.mxu0 0.0
        %372 = vmatmul.mubr.f32.gmra.mrb[0].mxu0 %v292
        %v373 = vpop.f32.mrb[0].mxu0
        %v374 = vadd.f32 0.0, %v373
        %v375 = vpop.f32.mrb[0].mxu0
        %376 = vmatprep.mubr.f32.mxu0 0.0
        %377 = vmatmul.mubr.f32.gmra.mrb[0].mxu0 %v295
        %v378 = vpop.f32.mrb[0].mxu0
        %v379 = vadd.f32 0.0, %v378
        %v380 = vpop.f32.mrb[0].mxu0
        %381 = vdwg.mxu0
        %v382 = vld [vmem:[%s2] sm:$0xff]
        %v383 = vld [vmem:[%s2 + $0x8] sm:$0xff]
        %v384 = vld [vmem:[%s2 + $0x10] sm:$0xff]
        %v385 = vld [vmem:[%s2 + $0x18] sm:$0xff]
        %v387 = vsel %vm284, %v382, 0
        %v390 = vsel %vm284, %v383, 0
        %v393 = vsel %vm284, %v384, 0
        %v396 = vsel %vm284, %v385, 0
        %398 = vmatprep.subr.mxu0 0.0
        %399 = vmatpush1.msra.mxu0 %v279
        %400 = vmatprep.subr.mxu0 0.0
        %401 = vmatpush1.msra.mxu0 0.0
        %402 = vmatprep.subr.mxu0 0.0
        %403 = vmatpush1.msra.mxu0 0.0
        %404 = vmatprep.subr.mxu0 0.0
        %405 = vmatpush1.msra.mxu0 0.0
        %406 = vmatprep.subr.mxu0 0.0
        %407 = vmatpush1.msra.mxu0 0.0
        %408 = vmatprep.subr.mxu0 0.0
        %409 = vmatpush1.msra.mxu0 0.0
        %410 = vmatprep.subr.mxu0 0.0
        %411 = vmatpush1.msra.mxu0 0.0
        %412 = vmatprep.subr.mxu0 0.0
        %413 = vmatpush1.msra.mxu0 0.0
        %414 = vmatprep.subr.mxu0 0.0
        %415 = vmatpush1.msra.mxu0 0.0
        %416 = vmatprep.subr.mxu0 0.0
        %417 = vmatpush1.msra.mxu0 0.0
        %418 = vmatprep.subr.mxu0 0.0
        %419 = vmatpush1.msra.mxu0 0.0
        %420 = vmatprep.subr.mxu0 0.0
        %421 = vmatpush1.msra.mxu0 0.0
        %422 = vmatprep.subr.mxu0 0.0
        %423 = vmatpush1.msra.mxu0 0.0
        %424 = vmatprep.subr.mxu0 0.0
        %425 = vmatpush1.msra.mxu0 0.0
        %426 = vmatprep.subr.mxu0 0.0
        %427 = vmatpush1.msra.mxu0 0.0
        %428 = vmatprep.subr.mxu0 0.0
        %429 = vmatpush1.msra.mxu0 0.0
        %430 = vmatprep.subr.mxu0 0.0
        %431 = vmatpush1.msra.mxu0 0.0
        %432 = vmatprep.subr.mxu0 0.0
        %433 = vmatpush1.msra.mxu0 0.0
        %434 = vmatprep.subr.mxu0 0.0
        %435 = vmatpush1.msra.mxu0 0.0
        %436 = vmatprep.subr.mxu0 0.0
        %437 = vmatpush1.msra.mxu0 0.0
        %438 = vmatprep.subr.mxu0 0.0
        %439 = vmatpush1.msra.mxu0 0.0
        %440 = vmatprep.subr.mxu0 0.0
        %441 = vmatpush1.msra.mxu0 0.0
        %442 = vmatprep.subr.mxu0 0.0
        %443 = vmatpush1.msra.mxu0 0.0
        %444 = vmatprep.subr.mxu0 0.0
        %445 = vmatpush1.msra.mxu0 0.0
        %446 = vmatprep.subr.mxu0 0.0
        %447 = vmatpush1.msra.mxu0 0.0
        %448 = vmatprep.subr.mxu0 0.0
        %449 = vmatpush1.msra.mxu0 0.0
        %450 = vmatprep.subr.mxu0 0.0
        %451 = vmatpush1.msra.mxu0 0.0
        %452 = vmatprep.subr.mxu0 0.0
        %453 = vmatpush1.msra.mxu0 0.0
        %454 = vmatprep.subr.mxu0 0.0
        %455 = vmatpush1.msra.mxu0 0.0
        %456 = vmatprep.subr.mxu0 0.0
        %457 = vmatpush1.msra.mxu0 0.0
        %458 = vmatprep.subr.mxu0 0.0
        %459 = vmatpush1.msra.mxu0 0.0
        %460 = vmatprep.subr.mxu0 0.0
        %461 = vmatpush1.msra.mxu0 0.0
        %462 = vmatprep.mubr.f32.mxu0 0.0
        %463 = vmatmul.mubr.f32.gmra.mrb[0].mxu0 %v387
        %v464 = vpop.f32.mrb[0].mxu0
        %v465 = vadd.f32 0.0, %v464
        %v466 = vpop.f32.mrb[0].mxu0
        %467 = vmatprep.mubr.f32.mxu0 0.0
        %468 = vmatmul.mubr.f32.gmra.mrb[0].mxu0 %v390
        %v469 = vpop.f32.mrb[0].mxu0
        %v470 = vadd.f32 0.0, %v469
        %v471 = vpop.f32.mrb[0].mxu0
        %472 = vmatprep.mubr.f32.mxu0 0.0
        %473 = vmatmul.mubr.f32.gmra.mrb[0].mxu0 %v393
        %v474 = vpop.f32.mrb[0].mxu0
        %v475 = vadd.f32 0.0, %v474
        %v476 = vpop.f32.mrb[0].mxu0
        %477 = vmatprep.mubr.f32.mxu0 0.0
        %478 = vmatmul.mubr.f32.gmra.mrb[0].mxu0 %v396
        %v479 = vpop.f32.mrb[0].mxu0
        %v480 = vadd.f32 0.0, %v479
        %v481 = vpop.f32.mrb[0].mxu0
        %482 = vdwg.mxu0
        %v483 = vld [vmem:[#allocation2] sm:$0xff]
        %v484 = vld [vmem:[#allocation2 + $0x8] sm:$0xff]
        %v485 = vld [vmem:[#allocation2 + $0x10] sm:$0xff]
        %v486 = vld [vmem:[#allocation2 + $0x18] sm:$0xff]
        %487 = vmax.xlane.f32.xlu0 %v364
        %v488 = vpop.xlane.xlu0 %487
        %489 = vmax.xlane.f32.xlu0 %v369
        %v490 = vpop.xlane.xlu0 %489
        %491 = vmax.xlane.f32.xlu0 %v374
        %v492 = vpop.xlane.xlu0 %491
        %493 = vmax.xlane.f32.xlu0 %v379
        %v494 = vpop.xlane.xlu0 %493
        %v495 = vmax.f32 %v483, %v488
        %v496 = vmax.f32 %v484, %v490
        %v497 = vmax.f32 %v485, %v492
        %v498 = vmax.f32 %v486, %v494
        %v499 = vsub.f32 %v483, %v495
        %v500 = vsub.f32 %v484, %v496
        %v501 = vsub.f32 %v485, %v497
        %v502 = vsub.f32 %v486, %v498
        %v503 = vmul.f32 %v499, 1.442695
        %v504 = vpow.pop %v503
        %v505 = vmul.f32 %v500, 1.442695
        %v506 = vpow.pop %v505
        %v507 = vmul.f32 %v501, 1.442695
        %v508 = vpow.pop %v507
        %v509 = vmul.f32 %v502, 1.442695
        %v510 = vpow.pop %v509
        %512 = vset.pattern.permute.xlu0 0
        %513 = vperm.xlu0 %512, %v495
        %v514 = vpop.permute.xlu0 %513
        %517 = vset.pattern.permute.xlu0 0
        %518 = vperm.xlu0 %517, %v496
        %v519 = vpop.permute.xlu0 %518
        %522 = vset.pattern.permute.xlu0 0
        %523 = vperm.xlu0 %522, %v497
        %v524 = vpop.permute.xlu0 %523
        %527 = vset.pattern.permute.xlu0 0
        %528 = vperm.xlu0 %527, %v498
        %v529 = vpop.permute.xlu0 %528
        %v531 = vsub.f32 %v364, %v514
        %v532 = vsub.f32 %v369, %v519
        %v533 = vsub.f32 %v374, %v524
        %v534 = vsub.f32 %v379, %v529
        %v535 = vmul.f32 %v531, 1.442695
        %v536 = vpow.pop %v535
        %v537 = vmul.f32 %v532, 1.442695
        %v538 = vpow.pop %v537
        %v539 = vmul.f32 %v533, 1.442695
        %v540 = vpow.pop %v539
        %v541 = vmul.f32 %v534, 1.442695
        %v542 = vpow.pop %v541
        %v543 = vld [vmem:[#allocation3] sm:$0xff]
        %v544 = vld [vmem:[#allocation3 + $0x8] sm:$0xff]
        %v545 = vld [vmem:[#allocation3 + $0x10] sm:$0xff]
        %v546 = vld [vmem:[#allocation3 + $0x18] sm:$0xff]
        %v547 = vmul.f32 %v504, %v543
        %v548 = vmul.f32 %v506, %v544
        %v549 = vmul.f32 %v508, %v545
        %v550 = vmul.f32 %v510, %v546
        %551 = vadd.xlane.f32.xlu0 %v536
        %v552 = vpop.xlane.xlu0 %551
        %553 = vadd.xlane.f32.xlu0 %v538
        %v554 = vpop.xlane.xlu0 %553
        %555 = vadd.xlane.f32.xlu0 %v540
        %v556 = vpop.xlane.xlu0 %555
        %557 = vadd.xlane.f32.xlu0 %v542
        %v558 = vpop.xlane.xlu0 %557
        %v559 = vadd.f32 %v547, %v552
        %v560 = vadd.f32 %v548, %v554
        %v561 = vadd.f32 %v549, %v556
        %v562 = vadd.f32 %v550, %v558
        %vm563 = vcmask 7168
        %564 = vst.msk [vmem:[#allocation3] sm:$0xff] %vm563, %v559
        %565 = vst.msk [vmem:[#allocation3 + $0x8] sm:$0xff] %vm563, %v560
        %566 = vst.msk [vmem:[#allocation3 + $0x10] sm:$0xff] %vm563, %v561
        %567 = vst.msk [vmem:[#allocation3 + $0x18] sm:$0xff] %vm563, %v562
        %568 = vmatprep.subr.mxu0 0.0
        %569 = vmatpush1.xpose.msra.mxu0 %v465
        %570 = vmatprep.subr.mxu0 0.0
        %571 = vmatpush1.xpose.msra.mxu0 0.0
        %572 = vmatprep.subr.mxu0 0.0
        %573 = vmatpush1.xpose.msra.mxu0 0.0
        %574 = vmatprep.subr.mxu0 0.0
        %575 = vmatpush1.xpose.msra.mxu0 0.0
        %576 = vmatprep.subr.mxu0 0.0
        %577 = vmatpush1.xpose.msra.mxu0 0.0
        %578 = vmatprep.subr.mxu0 0.0
        %579 = vmatpush1.xpose.msra.mxu0 0.0
        %580 = vmatprep.subr.mxu0 0.0
        %581 = vmatpush1.xpose.msra.mxu0 0.0
        %582 = vmatprep.subr.mxu0 0.0
        %583 = vmatpush1.xpose.msra.mxu0 0.0
        %584 = vmatprep.subr.mxu0 0.0
        %585 = vmatpush1.xpose.msra.mxu0 0.0
        %586 = vmatprep.subr.mxu0 0.0
        %587 = vmatpush1.xpose.msra.mxu0 0.0
        %588 = vmatprep.subr.mxu0 0.0
        %589 = vmatpush1.xpose.msra.mxu0 0.0
        %590 = vmatprep.subr.mxu0 0.0
        %591 = vmatpush1.xpose.msra.mxu0 0.0
        %592 = vmatprep.subr.mxu0 0.0
        %593 = vmatpush1.xpose.msra.mxu0 0.0
        %594 = vmatprep.subr.mxu0 0.0
        %595 = vmatpush1.xpose.msra.mxu0 0.0
        %596 = vmatprep.subr.mxu0 0.0
        %597 = vmatpush1.xpose.msra.mxu0 0.0
        %598 = vmatprep.subr.mxu0 0.0
        %599 = vmatpush1.xpose.msra.mxu0 0.0
        %600 = vmatprep.subr.mxu0 0.0
        %601 = vmatpush1.xpose.msra.mxu0 0.0
        %602 = vmatprep.subr.mxu0 0.0
        %603 = vmatpush1.xpose.msra.mxu0 0.0
        %604 = vmatprep.subr.mxu0 0.0
        %605 = vmatpush1.xpose.msra.mxu0 0.0
        %606 = vmatprep.subr.mxu0 0.0
        %607 = vmatpush1.xpose.msra.mxu0 0.0
        %608 = vmatprep.subr.mxu0 0.0
        %609 = vmatpush1.xpose.msra.mxu0 0.0
        %610 = vmatprep.subr.mxu0 0.0
        %611 = vmatpush1.xpose.msra.mxu0 0.0
        %612 = vmatprep.subr.mxu0 0.0
        %613 = vmatpush1.xpose.msra.mxu0 0.0
        %614 = vmatprep.subr.mxu0 0.0
        %615 = vmatpush1.xpose.msra.mxu0 0.0
        %616 = vmatprep.subr.mxu0 0.0
        %617 = vmatpush1.xpose.msra.mxu0 0.0
        %618 = vmatprep.subr.mxu0 0.0
        %619 = vmatpush1.xpose.msra.mxu0 0.0
        %620 = vmatprep.subr.mxu0 0.0
        %621 = vmatpush1.xpose.msra.mxu0 0.0
        %622 = vmatprep.subr.mxu0 0.0
        %623 = vmatpush1.xpose.msra.mxu0 0.0
        %624 = vmatprep.subr.mxu0 0.0
        %625 = vmatpush1.xpose.msra.mxu0 0.0
        %626 = vmatprep.subr.mxu0 0.0
        %627 = vmatpush1.xpose.msra.mxu0 0.0
        %628 = vmatprep.subr.mxu0 0.0
        %629 = vmatpush1.xpose.msra.mxu0 0.0
        %630 = vmatprep.subr.mxu0 0.0
        %631 = vmatpush1.xpose.msra.mxu0 0.0
        %632 = vmatprep.mubr.f32.mxu0 0.0
        %633 = vmatmul.mubr.f32.gmra.mrb[0].mxu0 %v536
        %v634 = vpop.f32.mrb[0].mxu0
        %v635 = vadd.f32 0.0, %v634
        %v636 = vpop.f32.mrb[0].mxu0
        %637 = vdwg.mxu0
        %638 = vmatprep.subr.mxu0 0.0
        %639 = vmatpush1.xpose.msra.mxu0 %v470
        %640 = vmatprep.subr.mxu0 0.0
        %641 = vmatpush1.xpose.msra.mxu0 0.0
        %642 = vmatprep.subr.mxu0 0.0
        %643 = vmatpush1.xpose.msra.mxu0 0.0
        %644 = vmatprep.subr.mxu0 0.0
        %645 = vmatpush1.xpose.msra.mxu0 0.0
        %646 = vmatprep.subr.mxu0 0.0
        %647 = vmatpush1.xpose.msra.mxu0 0.0
        %648 = vmatprep.subr.mxu0 0.0
        %649 = vmatpush1.xpose.msra.mxu0 0.0
        %650 = vmatprep.subr.mxu0 0.0
        %651 = vmatpush1.xpose.msra.mxu0 0.0
        %652 = vmatprep.subr.mxu0 0.0
        %653 = vmatpush1.xpose.msra.mxu0 0.0
        %654 = vmatprep.subr.mxu0 0.0
        %655 = vmatpush1.xpose.msra.mxu0 0.0
        %656 = vmatprep.subr.mxu0 0.0
        %657 = vmatpush1.xpose.msra.mxu0 0.0
        %658 = vmatprep.subr.mxu0 0.0
        %659 = vmatpush1.xpose.msra.mxu0 0.0
        %660 = vmatprep.subr.mxu0 0.0
        %661 = vmatpush1.xpose.msra.mxu0 0.0
        %662 = vmatprep.subr.mxu0 0.0
        %663 = vmatpush1.xpose.msra.mxu0 0.0
        %664 = vmatprep.subr.mxu0 0.0
        %665 = vmatpush1.xpose.msra.mxu0 0.0
        %666 = vmatprep.subr.mxu0 0.0
        %667 = vmatpush1.xpose.msra.mxu0 0.0
        %668 = vmatprep.subr.mxu0 0.0
        %669 = vmatpush1.xpose.msra.mxu0 0.0
        %670 = vmatprep.subr.mxu0 0.0
        %671 = vmatpush1.xpose.msra.mxu0 0.0
        %672 = vmatprep.subr.mxu0 0.0
        %673 = vmatpush1.xpose.msra.mxu0 0.0
        %674 = vmatprep.subr.mxu0 0.0
        %675 = vmatpush1.xpose.msra.mxu0 0.0
        %676 = vmatprep.subr.mxu0 0.0
        %677 = vmatpush1.xpose.msra.mxu0 0.0
        %678 = vmatprep.subr.mxu0 0.0
        %679 = vmatpush1.xpose.msra.mxu0 0.0
        %680 = vmatprep.subr.mxu0 0.0
        %681 = vmatpush1.xpose.msra.mxu0 0.0
        %682 = vmatprep.subr.mxu0 0.0
        %683 = vmatpush1.xpose.msra.mxu0 0.0
        %684 = vmatprep.subr.mxu0 0.0
        %685 = vmatpush1.xpose.msra.mxu0 0.0
        %686 = vmatprep.subr.mxu0 0.0
        %687 = vmatpush1.xpose.msra.mxu0 0.0
        %688 = vmatprep.subr.mxu0 0.0
        %689 = vmatpush1.xpose.msra.mxu0 0.0
        %690 = vmatprep.subr.mxu0 0.0
        %691 = vmatpush1.xpose.msra.mxu0 0.0
        %692 = vmatprep.subr.mxu0 0.0
        %693 = vmatpush1.xpose.msra.mxu0 0.0
        %694 = vmatprep.subr.mxu0 0.0
        %695 = vmatpush1.xpose.msra.mxu0 0.0
        %696 = vmatprep.subr.mxu0 0.0
        %697 = vmatpush1.xpose.msra.mxu0 0.0
        %698 = vmatprep.subr.mxu0 0.0
        %699 = vmatpush1.xpose.msra.mxu0 0.0
        %700 = vmatprep.subr.mxu0 0.0
        %701 = vmatpush1.xpose.msra.mxu0 0.0
        %702 = vmatprep.mubr.f32.mxu0 0.0
        %703 = vmatmul.mubr.f32.gmra.mrb[0].mxu0 %v538
        %v704 = vpop.f32.mrb[0].mxu0
        %v705 = vadd.f32 0.0, %v704
        %v706 = vpop.f32.mrb[0].mxu0
        %707 = vdwg.mxu0
        %708 = vmatprep.subr.mxu0 0.0
        %709 = vmatpush1.xpose.msra.mxu0 %v475
        %710 = vmatprep.subr.mxu0 0.0
        %711 = vmatpush1.xpose.msra.mxu0 0.0
        %712 = vmatprep.subr.mxu0 0.0
        %713 = vmatpush1.xpose.msra.mxu0 0.0
        %714 = vmatprep.subr.mxu0 0.0
        %715 = vmatpush1.xpose.msra.mxu0 0.0
        %716 = vmatprep.subr.mxu0 0.0
        %717 = vmatpush1.xpose.msra.mxu0 0.0
        %718 = vmatprep.subr.mxu0 0.0
        %719 = vmatpush1.xpose.msra.mxu0 0.0
        %720 = vmatprep.subr.mxu0 0.0
        %721 = vmatpush1.xpose.msra.mxu0 0.0
        %722 = vmatprep.subr.mxu0 0.0
        %723 = vmatpush1.xpose.msra.mxu0 0.0
        %724 = vmatprep.subr.mxu0 0.0
        %725 = vmatpush1.xpose.msra.mxu0 0.0
        %726 = vmatprep.subr.mxu0 0.0
        %727 = vmatpush1.xpose.msra.mxu0 0.0
        %728 = vmatprep.subr.mxu0 0.0
        %729 = vmatpush1.xpose.msra.mxu0 0.0
        %730 = vmatprep.subr.mxu0 0.0
        %731 = vmatpush1.xpose.msra.mxu0 0.0
        %732 = vmatprep.subr.mxu0 0.0
        %733 = vmatpush1.xpose.msra.mxu0 0.0
        %734 = vmatprep.subr.mxu0 0.0
        %735 = vmatpush1.xpose.msra.mxu0 0.0
        %736 = vmatprep.subr.mxu0 0.0
        %737 = vmatpush1.xpose.msra.mxu0 0.0
        %738 = vmatprep.subr.mxu0 0.0
        %739 = vmatpush1.xpose.msra.mxu0 0.0
        %740 = vmatprep.subr.mxu0 0.0
        %741 = vmatpush1.xpose.msra.mxu0 0.0
        %742 = vmatprep.subr.mxu0 0.0
        %743 = vmatpush1.xpose.msra.mxu0 0.0
        %744 = vmatprep.subr.mxu0 0.0
        %745 = vmatpush1.xpose.msra.mxu0 0.0
        %746 = vmatprep.subr.mxu0 0.0
        %747 = vmatpush1.xpose.msra.mxu0 0.0
        %748 = vmatprep.subr.mxu0 0.0
        %749 = vmatpush1.xpose.msra.mxu0 0.0
        %750 = vmatprep.subr.mxu0 0.0
        %751 = vmatpush1.xpose.msra.mxu0 0.0
        %752 = vmatprep.subr.mxu0 0.0
        %753 = vmatpush1.xpose.msra.mxu0 0.0
        %754 = vmatprep.subr.mxu0 0.0
        %755 = vmatpush1.xpose.msra.mxu0 0.0
        %756 = vmatprep.subr.mxu0 0.0
        %757 = vmatpush1.xpose.msra.mxu0 0.0
        %758 = vmatprep.subr.mxu0 0.0
        %759 = vmatpush1.xpose.msra.mxu0 0.0
        %760 = vmatprep.subr.mxu0 0.0
        %761 = vmatpush1.xpose.msra.mxu0 0.0
        %762 = vmatprep.subr.mxu0 0.0
        %763 = vmatpush1.xpose.msra.mxu0 0.0
        %764 = vmatprep.subr.mxu0 0.0
        %765 = vmatpush1.xpose.msra.mxu0 0.0
        %766 = vmatprep.subr.mxu0 0.0
        %767 = vmatpush1.xpose.msra.mxu0 0.0
        %768 = vmatprep.subr.mxu0 0.0
        %769 = vmatpush1.xpose.msra.mxu0 0.0
        %770 = vmatprep.subr.mxu0 0.0
        %771 = vmatpush1.xpose.msra.mxu0 0.0
        %772 = vmatprep.mubr.f32.mxu0 0.0
        %773 = vmatmul.mubr.f32.gmra.mrb[0].mxu0 %v540
        %v774 = vpop.f32.mrb[0].mxu0
        %v775 = vadd.f32 0.0, %v774
        %v776 = vpop.f32.mrb[0].mxu0
        %777 = vdwg.mxu0
        %778 = vmatprep.subr.mxu0 0.0
        %779 = vmatpush1.xpose.msra.mxu0 %v480
        %780 = vmatprep.subr.mxu0 0.0
        %781 = vmatpush1.xpose.msra.mxu0 0.0
        %782 = vmatprep.subr.mxu0 0.0
        %783 = vmatpush1.xpose.msra.mxu0 0.0
        %784 = vmatprep.subr.mxu0 0.0
        %785 = vmatpush1.xpose.msra.mxu0 0.0
        %786 = vmatprep.subr.mxu0 0.0
        %787 = vmatpush1.xpose.msra.mxu0 0.0
        %788 = vmatprep.subr.mxu0 0.0
        %789 = vmatpush1.xpose.msra.mxu0 0.0
        %790 = vmatprep.subr.mxu0 0.0
        %791 = vmatpush1.xpose.msra.mxu0 0.0
        %792 = vmatprep.subr.mxu0 0.0
        %793 = vmatpush1.xpose.msra.mxu0 0.0
        %794 = vmatprep.subr.mxu0 0.0
        %795 = vmatpush1.xpose.msra.mxu0 0.0
        %796 = vmatprep.subr.mxu0 0.0
        %797 = vmatpush1.xpose.msra.mxu0 0.0
        %798 = vmatprep.subr.mxu0 0.0
        %799 = vmatpush1.xpose.msra.mxu0 0.0
        %800 = vmatprep.subr.mxu0 0.0
        %801 = vmatpush1.xpose.msra.mxu0 0.0
        %802 = vmatprep.subr.mxu0 0.0
        %803 = vmatpush1.xpose.msra.mxu0 0.0
        %804 = vmatprep.subr.mxu0 0.0
        %805 = vmatpush1.xpose.msra.mxu0 0.0
        %806 = vmatprep.subr.mxu0 0.0
        %807 = vmatpush1.xpose.msra.mxu0 0.0
        %808 = vmatprep.subr.mxu0 0.0
        %809 = vmatpush1.xpose.msra.mxu0 0.0
        %810 = vmatprep.subr.mxu0 0.0
        %811 = vmatpush1.xpose.msra.mxu0 0.0
        %812 = vmatprep.subr.mxu0 0.0
        %813 = vmatpush1.xpose.msra.mxu0 0.0
        %814 = vmatprep.subr.mxu0 0.0
        %815 = vmatpush1.xpose.msra.mxu0 0.0
        %816 = vmatprep.subr.mxu0 0.0
        %817 = vmatpush1.xpose.msra.mxu0 0.0
        %818 = vmatprep.subr.mxu0 0.0
        %819 = vmatpush1.xpose.msra.mxu0 0.0
        %820 = vmatprep.subr.mxu0 0.0
        %821 = vmatpush1.xpose.msra.mxu0 0.0
        %822 = vmatprep.subr.mxu0 0.0
        %823 = vmatpush1.xpose.msra.mxu0 0.0
        %824 = vmatprep.subr.mxu0 0.0
        %825 = vmatpush1.xpose.msra.mxu0 0.0
        %826 = vmatprep.subr.mxu0 0.0
        %827 = vmatpush1.xpose.msra.mxu0 0.0
        %828 = vmatprep.subr.mxu0 0.0
        %829 = vmatpush1.xpose.msra.mxu0 0.0
        %830 = vmatprep.subr.mxu0 0.0
        %831 = vmatpush1.xpose.msra.mxu0 0.0
        %832 = vmatprep.subr.mxu0 0.0
        %833 = vmatpush1.xpose.msra.mxu0 0.0
        %834 = vmatprep.subr.mxu0 0.0
        %835 = vmatpush1.xpose.msra.mxu0 0.0
        %836 = vmatprep.subr.mxu0 0.0
        %837 = vmatpush1.xpose.msra.mxu0 0.0
        %838 = vmatprep.subr.mxu0 0.0
        %839 = vmatpush1.xpose.msra.mxu0 0.0
        %840 = vmatprep.subr.mxu0 0.0
        %841 = vmatpush1.xpose.msra.mxu0 0.0
        %842 = vmatprep.mubr.f32.mxu0 0.0
        %843 = vmatmul.mubr.f32.gmra.mrb[0].mxu0 %v542
        %v844 = vpop.f32.mrb[0].mxu0
        %v845 = vadd.f32 0.0, %v844
        %v846 = vpop.f32.mrb[0].mxu0
        %847 = vdwg.mxu0
        %v848 = vld [vmem:[#allocation4] sm:$0xff]
        %v849 = vld [vmem:[#allocation4 + $0x8] sm:$0xff]
        %v850 = vld [vmem:[#allocation4 + $0x10] sm:$0xff]
        %v851 = vld [vmem:[#allocation4 + $0x18] sm:$0xff]
        %853 = vset.pattern.permute.xlu0 0
        %854 = vperm.xlu0 %853, %v504
        %v855 = vpop.permute.xlu0 %854
        %858 = vset.pattern.permute.xlu0 0
        %859 = vperm.xlu0 %858, %v506
        %v860 = vpop.permute.xlu0 %859
        %863 = vset.pattern.permute.xlu0 0
        %864 = vperm.xlu0 %863, %v508
        %v865 = vpop.permute.xlu0 %864
        %868 = vset.pattern.permute.xlu0 0
        %869 = vperm.xlu0 %868, %v510
        %v870 = vpop.permute.xlu0 %869
        %v872 = vmul.f32 %v855, %v848
        %v873 = vmul.f32 %v860, %v849
        %v874 = vmul.f32 %v865, %v850
        %v875 = vmul.f32 %v870, %v851
        %v876 = vadd.f32 %v872, %v635
        %v877 = vadd.f32 %v873, %v705
        %v878 = vadd.f32 %v874, %v775
        %v879 = vadd.f32 %v875, %v845
        %880 = vst.msk [vmem:[#allocation4] sm:$0xff] %vm284, %v876
        %881 = vst.msk [vmem:[#allocation4 + $0x8] sm:$0xff] %vm284, %v877
        %882 = vst.msk [vmem:[#allocation4 + $0x10] sm:$0xff] %vm284, %v878
        %883 = vst.msk [vmem:[#allocation4 + $0x18] sm:$0xff] %vm284, %v879
        %884 = vst.msk [vmem:[#allocation2] sm:$0xff] %vm563, %v495
        %885 = vst.msk [vmem:[#allocation2 + $0x8] sm:$0xff] %vm563, %v496
        %886 = vst.msk [vmem:[#allocation2 + $0x10] sm:$0xff] %vm563, %v497
        %887 = vst.msk [vmem:[#allocation2 + $0x18] sm:$0xff] %vm563, %v498
        %p888 = scmp.eq.s32.totalorder %s25, 1
        // Predicated region
        $region49: #{tpu_custom_call.1} parent=39 // pred_check
          %p889 = pneg %p888
        $region50: #{tpu_custom_call.1} parent=39 // pred_check_branch
          %891 = sbr.rel (%p889) target = $region52
        $region51: #{tpu_custom_call.1} parent=39 // pred_region
          %v892 = vld [vmem:[#allocation3] sm:$0xff]
          %v893 = vld [vmem:[#allocation3 + $0x8] sm:$0xff]
          %v894 = vld [vmem:[#allocation3 + $0x10] sm:$0xff]
          %v895 = vld [vmem:[#allocation3 + $0x18] sm:$0xff]
          %v896 = vrcp.pop %v892
          %v897 = vrcp.pop %v893
          %v898 = vrcp.pop %v894
          %v899 = vrcp.pop %v895
          %v900 = vld [vmem:[#allocation4] sm:$0xff]
          %v901 = vld [vmem:[#allocation4 + $0x8] sm:$0xff]
          %v902 = vld [vmem:[#allocation4 + $0x10] sm:$0xff]
          %v903 = vld [vmem:[#allocation4 + $0x18] sm:$0xff]
          %905 = vset.pattern.permute.xlu0 0
          %906 = vperm.xlu0 %905, %v896
          %v907 = vpop.permute.xlu0 %906
          %910 = vset.pattern.permute.xlu0 0
          %911 = vperm.xlu0 %910, %v897
          %v912 = vpop.permute.xlu0 %911
          %915 = vset.pattern.permute.xlu0 0
          %916 = vperm.xlu0 %915, %v898
          %v917 = vpop.permute.xlu0 %916
          %920 = vset.pattern.permute.xlu0 0
          %921 = vperm.xlu0 %920, %v899
          %v922 = vpop.permute.xlu0 %921
          %v924 = vmul.f32 %v900, %v907
          %v925 = vmul.f32 %v901, %v912
          %v926 = vmul.f32 %v902, %v917
          %v927 = vmul.f32 %v903, %v922
          %v928 = vld [vmem:[#allocation5] sm:$0xff]
          %v929 = vld [vmem:[#allocation5 + $0x8] sm:$0xff]
          %v930 = vld [vmem:[#allocation5 + $0x10] sm:$0xff]
          %v931 = vld [vmem:[#allocation5 + $0x18] sm:$0xff]
          %v933 = vsel %vm284, %v928, 0
          %v936 = vsel %vm284, %v924, 0
          %938 = vmatprep.subr.mxu0 0.0
          %939 = vmatpush1.xpose.msra.mxu0 %v936
          %940 = vmatprep.subr.mxu0 0.0
          %941 = vmatpush1.xpose.msra.mxu0 0.0
          %942 = vmatprep.subr.mxu0 0.0
          %943 = vmatpush1.xpose.msra.mxu0 0.0
          %944 = vmatprep.subr.mxu0 0.0
          %945 = vmatpush1.xpose.msra.mxu0 0.0
          %946 = vmatprep.subr.mxu0 0.0
          %947 = vmatpush1.xpose.msra.mxu0 0.0
          %948 = vmatprep.subr.mxu0 0.0
          %949 = vmatpush1.xpose.msra.mxu0 0.0
          %950 = vmatprep.subr.mxu0 0.0
          %951 = vmatpush1.xpose.msra.mxu0 0.0
          %952 = vmatprep.subr.mxu0 0.0
          %953 = vmatpush1.xpose.msra.mxu0 0.0
          %954 = vmatprep.subr.mxu0 0.0
          %955 = vmatpush1.xpose.msra.mxu0 0.0
          %956 = vmatprep.subr.mxu0 0.0
          %957 = vmatpush1.xpose.msra.mxu0 0.0
          %958 = vmatprep.subr.mxu0 0.0
          %959 = vmatpush1.xpose.msra.mxu0 0.0
          %960 = vmatprep.subr.mxu0 0.0
          %961 = vmatpush1.xpose.msra.mxu0 0.0
          %962 = vmatprep.subr.mxu0 0.0
          %963 = vmatpush1.xpose.msra.mxu0 0.0
          %964 = vmatprep.subr.mxu0 0.0
          %965 = vmatpush1.xpose.msra.mxu0 0.0
          %966 = vmatprep.subr.mxu0 0.0
          %967 = vmatpush1.xpose.msra.mxu0 0.0
          %968 = vmatprep.subr.mxu0 0.0
          %969 = vmatpush1.xpose.msra.mxu0 0.0
          %970 = vmatprep.subr.mxu0 0.0
          %971 = vmatpush1.xpose.msra.mxu0 0.0
          %972 = vmatprep.subr.mxu0 0.0
          %973 = vmatpush1.xpose.msra.mxu0 0.0
          %974 = vmatprep.subr.mxu0 0.0
          %975 = vmatpush1.xpose.msra.mxu0 0.0
          %976 = vmatprep.subr.mxu0 0.0
          %977 = vmatpush1.xpose.msra.mxu0 0.0
          %978 = vmatprep.subr.mxu0 0.0
          %979 = vmatpush1.xpose.msra.mxu0 0.0
          %980 = vmatprep.subr.mxu0 0.0
          %981 = vmatpush1.xpose.msra.mxu0 0.0
          %982 = vmatprep.subr.mxu0 0.0
          %983 = vmatpush1.xpose.msra.mxu0 0.0
          %984 = vmatprep.subr.mxu0 0.0
          %985 = vmatpush1.xpose.msra.mxu0 0.0
          %986 = vmatprep.subr.mxu0 0.0
          %987 = vmatpush1.xpose.msra.mxu0 0.0
          %988 = vmatprep.subr.mxu0 0.0
          %989 = vmatpush1.xpose.msra.mxu0 0.0
          %990 = vmatprep.subr.mxu0 0.0
          %991 = vmatpush1.xpose.msra.mxu0 0.0
          %992 = vmatprep.subr.mxu0 0.0
          %993 = vmatpush1.xpose.msra.mxu0 0.0
          %994 = vmatprep.subr.mxu0 0.0
          %995 = vmatpush1.xpose.msra.mxu0 0.0
          %996 = vmatprep.subr.mxu0 0.0
          %997 = vmatpush1.xpose.msra.mxu0 0.0
          %998 = vmatprep.subr.mxu0 0.0
          %999 = vmatpush1.xpose.msra.mxu0 0.0
          %1000 = vmatprep.subr.mxu0 0.0
          %1001 = vmatpush1.xpose.msra.mxu0 0.0
          %1002 = vmatprep.mubr.f32.mxu0 0.0
          %1003 = vmatmul.mubr.f32.gmra.mrb[0].mxu0 %v933
          %v1004 = vpop.f32.mrb[0].mxu0
          %v1005 = vadd.f32 0.0, %v1004
          %v1006 = vpop.f32.mrb[0].mxu0
          %1007 = vdwg.mxu0
          %v1009 = vsel %vm284, %v929, 0
          %v1012 = vsel %vm284, %v925, 0
          %1014 = vmatprep.subr.mxu0 0.0
          %1015 = vmatpush1.xpose.msra.mxu0 %v1012
          %1016 = vmatprep.subr.mxu0 0.0
          %1017 = vmatpush1.xpose.msra.mxu0 0.0
          %1018 = vmatprep.subr.mxu0 0.0
          %1019 = vmatpush1.xpose.msra.mxu0 0.0
          %1020 = vmatprep.subr.mxu0 0.0
          %1021 = vmatpush1.xpose.msra.mxu0 0.0
          %1022 = vmatprep.subr.mxu0 0.0
          %1023 = vmatpush1.xpose.msra.mxu0 0.0
          %1024 = vmatprep.subr.mxu0 0.0
          %1025 = vmatpush1.xpose.msra.mxu0 0.0
          %1026 = vmatprep.subr.mxu0 0.0
          %1027 = vmatpush1.xpose.msra.mxu0 0.0
          %1028 = vmatprep.subr.mxu0 0.0
          %1029 = vmatpush1.xpose.msra.mxu0 0.0
          %1030 = vmatprep.subr.mxu0 0.0
          %1031 = vmatpush1.xpose.msra.mxu0 0.0
          %1032 = vmatprep.subr.mxu0 0.0
          %1033 = vmatpush1.xpose.msra.mxu0 0.0
          %1034 = vmatprep.subr.mxu0 0.0
          %1035 = vmatpush1.xpose.msra.mxu0 0.0
          %1036 = vmatprep.subr.mxu0 0.0
          %1037 = vmatpush1.xpose.msra.mxu0 0.0
          %1038 = vmatprep.subr.mxu0 0.0
          %1039 = vmatpush1.xpose.msra.mxu0 0.0
          %1040 = vmatprep.subr.mxu0 0.0
          %1041 = vmatpush1.xpose.msra.mxu0 0.0
          %1042 = vmatprep.subr.mxu0 0.0
          %1043 = vmatpush1.xpose.msra.mxu0 0.0
          %1044 = vmatprep.subr.mxu0 0.0
          %1045 = vmatpush1.xpose.msra.mxu0 0.0
          %1046 = vmatprep.subr.mxu0 0.0
          %1047 = vmatpush1.xpose.msra.mxu0 0.0
          %1048 = vmatprep.subr.mxu0 0.0
          %1049 = vmatpush1.xpose.msra.mxu0 0.0
          %1050 = vmatprep.subr.mxu0 0.0
          %1051 = vmatpush1.xpose.msra.mxu0 0.0
          %1052 = vmatprep.subr.mxu0 0.0
          %1053 = vmatpush1.xpose.msra.mxu0 0.0
          %1054 = vmatprep.subr.mxu0 0.0
          %1055 = vmatpush1.xpose.msra.mxu0 0.0
          %1056 = vmatprep.subr.mxu0 0.0
          %1057 = vmatpush1.xpose.msra.mxu0 0.0
          %1058 = vmatprep.subr.mxu0 0.0
          %1059 = vmatpush1.xpose.msra.mxu0 0.0
          %1060 = vmatprep.subr.mxu0 0.0
          %1061 = vmatpush1.xpose.msra.mxu0 0.0
          %1062 = vmatprep.subr.mxu0 0.0
          %1063 = vmatpush1.xpose.msra.mxu0 0.0
          %1064 = vmatprep.subr.mxu0 0.0
          %1065 = vmatpush1.xpose.msra.mxu0 0.0
          %1066 = vmatprep.subr.mxu0 0.0
          %1067 = vmatpush1.xpose.msra.mxu0 0.0
          %1068 = vmatprep.subr.mxu0 0.0
          %1069 = vmatpush1.xpose.msra.mxu0 0.0
          %1070 = vmatprep.subr.mxu0 0.0
          %1071 = vmatpush1.xpose.msra.mxu0 0.0
          %1072 = vmatprep.subr.mxu0 0.0
          %1073 = vmatpush1.xpose.msra.mxu0 0.0
          %1074 = vmatprep.subr.mxu0 0.0
          %1075 = vmatpush1.xpose.msra.mxu0 0.0
          %1076 = vmatprep.subr.mxu0 0.0
          %1077 = vmatpush1.xpose.msra.mxu0 0.0
          %1078 = vmatprep.mubr.f32.mxu0 0.0
          %1079 = vmatmul.mubr.f32.gmra.mrb[0].mxu0 %v1009
          %v1080 = vpop.f32.mrb[0].mxu0
          %v1081 = vadd.f32 0.0, %v1080
          %v1082 = vpop.f32.mrb[0].mxu0
          %1083 = vdwg.mxu0
          %v1085 = vsel %vm284, %v930, 0
          %v1088 = vsel %vm284, %v926, 0
          %1090 = vmatprep.subr.mxu0 0.0
          %1091 = vmatpush1.xpose.msra.mxu0 %v1088
          %1092 = vmatprep.subr.mxu0 0.0
          %1093 = vmatpush1.xpose.msra.mxu0 0.0
          %1094 = vmatprep.subr.mxu0 0.0
          %1095 = vmatpush1.xpose.msra.mxu0 0.0
          %1096 = vmatprep.subr.mxu0 0.0
          %1097 = vmatpush1.xpose.msra.mxu0 0.0
          %1098 = vmatprep.subr.mxu0 0.0
          %1099 = vmatpush1.xpose.msra.mxu0 0.0
          %1100 = vmatprep.subr.mxu0 0.0
          %1101 = vmatpush1.xpose.msra.mxu0 0.0
          %1102 = vmatprep.subr.mxu0 0.0
          %1103 = vmatpush1.xpose.msra.mxu0 0.0
          %1104 = vmatprep.subr.mxu0 0.0
          %1105 = vmatpush1.xpose.msra.mxu0 0.0
          %1106 = vmatprep.subr.mxu0 0.0
          %1107 = vmatpush1.xpose.msra.mxu0 0.0
          %1108 = vmatprep.subr.mxu0 0.0
          %1109 = vmatpush1.xpose.msra.mxu0 0.0
          %1110 = vmatprep.subr.mxu0 0.0
          %1111 = vmatpush1.xpose.msra.mxu0 0.0
          %1112 = vmatprep.subr.mxu0 0.0
          %1113 = vmatpush1.xpose.msra.mxu0 0.0
          %1114 = vmatprep.subr.mxu0 0.0
          %1115 = vmatpush1.xpose.msra.mxu0 0.0
          %1116 = vmatprep.subr.mxu0 0.0
          %1117 = vmatpush1.xpose.msra.mxu0 0.0
          %1118 = vmatprep.subr.mxu0 0.0
          %1119 = vmatpush1.xpose.msra.mxu0 0.0
          %1120 = vmatprep.subr.mxu0 0.0
          %1121 = vmatpush1.xpose.msra.mxu0 0.0
          %1122 = vmatprep.subr.mxu0 0.0
          %1123 = vmatpush1.xpose.msra.mxu0 0.0
          %1124 = vmatprep.subr.mxu0 0.0
          %1125 = vmatpush1.xpose.msra.mxu0 0.0
          %1126 = vmatprep.subr.mxu0 0.0
          %1127 = vmatpush1.xpose.msra.mxu0 0.0
          %1128 = vmatprep.subr.mxu0 0.0
          %1129 = vmatpush1.xpose.msra.mxu0 0.0
          %1130 = vmatprep.subr.mxu0 0.0
          %1131 = vmatpush1.xpose.msra.mxu0 0.0
          %1132 = vmatprep.subr.mxu0 0.0
          %1133 = vmatpush1.xpose.msra.mxu0 0.0
          %1134 = vmatprep.subr.mxu0 0.0
          %1135 = vmatpush1.xpose.msra.mxu0 0.0
          %1136 = vmatprep.subr.mxu0 0.0
          %1137 = vmatpush1.xpose.msra.mxu0 0.0
          %1138 = vmatprep.subr.mxu0 0.0
          %1139 = vmatpush1.xpose.msra.mxu0 0.0
          %1140 = vmatprep.subr.mxu0 0.0
          %1141 = vmatpush1.xpose.msra.mxu0 0.0
          %1142 = vmatprep.subr.mxu0 0.0
          %1143 = vmatpush1.xpose.msra.mxu0 0.0
          %1144 = vmatprep.subr.mxu0 0.0
          %1145 = vmatpush1.xpose.msra.mxu0 0.0
          %1146 = vmatprep.subr.mxu0 0.0
          %1147 = vmatpush1.xpose.msra.mxu0 0.0
          %1148 = vmatprep.subr.mxu0 0.0
          %1149 = vmatpush1.xpose.msra.mxu0 0.0
          %1150 = vmatprep.subr.mxu0 0.0
          %1151 = vmatpush1.xpose.msra.mxu0 0.0
          %1152 = vmatprep.subr.mxu0 0.0
          %1153 = vmatpush1.xpose.msra.mxu0 0.0
          %1154 = vmatprep.mubr.f32.mxu0 0.0
          %1155 = vmatmul.mubr.f32.gmra.mrb[0].mxu0 %v1085
          %v1156 = vpop.f32.mrb[0].mxu0
          %v1157 = vadd.f32 0.0, %v1156
          %v1158 = vpop.f32.mrb[0].mxu0
          %1159 = vdwg.mxu0
          %v1161 = vsel %vm284, %v931, 0
          %v1164 = vsel %vm284, %v927, 0
          %1166 = vmatprep.subr.mxu0 0.0
          %1167 = vmatpush1.xpose.msra.mxu0 %v1164
          %1168 = vmatprep.subr.mxu0 0.0
          %1169 = vmatpush1.xpose.msra.mxu0 0.0
          %1170 = vmatprep.subr.mxu0 0.0
          %1171 = vmatpush1.xpose.msra.mxu0 0.0
          %1172 = vmatprep.subr.mxu0 0.0
          %1173 = vmatpush1.xpose.msra.mxu0 0.0
          %1174 = vmatprep.subr.mxu0 0.0
          %1175 = vmatpush1.xpose.msra.mxu0 0.0
          %1176 = vmatprep.subr.mxu0 0.0
          %1177 = vmatpush1.xpose.msra.mxu0 0.0
          %1178 = vmatprep.subr.mxu0 0.0
          %1179 = vmatpush1.xpose.msra.mxu0 0.0
          %1180 = vmatprep.subr.mxu0 0.0
          %1181 = vmatpush1.xpose.msra.mxu0 0.0
          %1182 = vmatprep.subr.mxu0 0.0
          %1183 = vmatpush1.xpose.msra.mxu0 0.0
          %1184 = vmatprep.subr.mxu0 0.0
          %1185 = vmatpush1.xpose.msra.mxu0 0.0
          %1186 = vmatprep.subr.mxu0 0.0
          %1187 = vmatpush1.xpose.msra.mxu0 0.0
          %1188 = vmatprep.subr.mxu0 0.0
          %1189 = vmatpush1.xpose.msra.mxu0 0.0
          %1190 = vmatprep.subr.mxu0 0.0
          %1191 = vmatpush1.xpose.msra.mxu0 0.0
          %1192 = vmatprep.subr.mxu0 0.0
          %1193 = vmatpush1.xpose.msra.mxu0 0.0
          %1194 = vmatprep.subr.mxu0 0.0
          %1195 = vmatpush1.xpose.msra.mxu0 0.0
          %1196 = vmatprep.subr.mxu0 0.0
          %1197 = vmatpush1.xpose.msra.mxu0 0.0
          %1198 = vmatprep.subr.mxu0 0.0
          %1199 = vmatpush1.xpose.msra.mxu0 0.0
          %1200 = vmatprep.subr.mxu0 0.0
          %1201 = vmatpush1.xpose.msra.mxu0 0.0
          %1202 = vmatprep.subr.mxu0 0.0
          %1203 = vmatpush1.xpose.msra.mxu0 0.0
          %1204 = vmatprep.subr.mxu0 0.0
          %1205 = vmatpush1.xpose.msra.mxu0 0.0
          %1206 = vmatprep.subr.mxu0 0.0
          %1207 = vmatpush1.xpose.msra.mxu0 0.0
          %1208 = vmatprep.subr.mxu0 0.0
          %1209 = vmatpush1.xpose.msra.mxu0 0.0
          %1210 = vmatprep.subr.mxu0 0.0
          %1211 = vmatpush1.xpose.msra.mxu0 0.0
          %1212 = vmatprep.subr.mxu0 0.0
          %1213 = vmatpush1.xpose.msra.mxu0 0.0
          %1214 = vmatprep.subr.mxu0 0.0
          %1215 = vmatpush1.xpose.msra.mxu0 0.0
          %1216 = vmatprep.subr.mxu0 0.0
          %1217 = vmatpush1.xpose.msra.mxu0 0.0
          %1218 = vmatprep.subr.mxu0 0.0
          %1219 = vmatpush1.xpose.msra.mxu0 0.0
          %1220 = vmatprep.subr.mxu0 0.0
          %1221 = vmatpush1.xpose.msra.mxu0 0.0
          %1222 = vmatprep.subr.mxu0 0.0
          %1223 = vmatpush1.xpose.msra.mxu0 0.0
          %1224 = vmatprep.subr.mxu0 0.0
          %1225 = vmatpush1.xpose.msra.mxu0 0.0
          %1226 = vmatprep.subr.mxu0 0.0
          %1227 = vmatpush1.xpose.msra.mxu0 0.0
          %1228 = vmatprep.subr.mxu0 0.0
          %1229 = vmatpush1.xpose.msra.mxu0 0.0
          %1230 = vmatprep.mubr.f32.mxu0 0.0
          %1231 = vmatmul.mubr.f32.gmra.mrb[0].mxu0 %v1161
          %v1232 = vpop.f32.mrb[0].mxu0
          %v1233 = vadd.f32 0.0, %v1232
          %v1234 = vpop.f32.mrb[0].mxu0
          %1235 = vdwg.mxu0
          %v1236 = vld [vmem:[%s3] sm:$0xff]
          %v1237 = vld [vmem:[%s3 + $0x8] sm:$0xff]
          %v1238 = vld [vmem:[%s3 + $0x10] sm:$0xff]
          %v1239 = vld [vmem:[%s3 + $0x18] sm:$0xff]
          %v1241 = vsel %vm284, %v1005, 0
          %1243 = vmatprep.subr.mxu0 0.0
          %1244 = vmatpush1.msra.mxu0 %v1236
          %1245 = vmatprep.subr.mxu0 0.0
          %1246 = vmatpush1.msra.mxu0 0.0
          %1247 = vmatprep.subr.mxu0 0.0
          %1248 = vmatpush1.msra.mxu0 0.0
          %1249 = vmatprep.subr.mxu0 0.0
          %1250 = vmatpush1.msra.mxu0 0.0
          %1251 = vmatprep.subr.mxu0 0.0
          %1252 = vmatpush1.msra.mxu0 0.0
          %1253 = vmatprep.subr.mxu0 0.0
          %1254 = vmatpush1.msra.mxu0 0.0
          %1255 = vmatprep.subr.mxu0 0.0
          %1256 = vmatpush1.msra.mxu0 0.0
          %1257 = vmatprep.subr.mxu0 0.0
          %1258 = vmatpush1.msra.mxu0 0.0
          %1259 = vmatprep.subr.mxu0 0.0
          %1260 = vmatpush1.msra.mxu0 0.0
          %1261 = vmatprep.subr.mxu0 0.0
          %1262 = vmatpush1.msra.mxu0 0.0
          %1263 = vmatprep.subr.mxu0 0.0
          %1264 = vmatpush1.msra.mxu0 0.0
          %1265 = vmatprep.subr.mxu0 0.0
          %1266 = vmatpush1.msra.mxu0 0.0
          %1267 = vmatprep.subr.mxu0 0.0
          %1268 = vmatpush1.msra.mxu0 0.0
          %1269 = vmatprep.subr.mxu0 0.0
          %1270 = vmatpush1.msra.mxu0 0.0
          %1271 = vmatprep.subr.mxu0 0.0
          %1272 = vmatpush1.msra.mxu0 0.0
          %1273 = vmatprep.subr.mxu0 0.0
          %1274 = vmatpush1.msra.mxu0 0.0
          %1275 = vmatprep.subr.mxu0 0.0
          %1276 = vmatpush1.msra.mxu0 0.0
          %1277 = vmatprep.subr.mxu0 0.0
          %1278 = vmatpush1.msra.mxu0 0.0
          %1279 = vmatprep.subr.mxu0 0.0
          %1280 = vmatpush1.msra.mxu0 0.0
          %1281 = vmatprep.subr.mxu0 0.0
          %1282 = vmatpush1.msra.mxu0 0.0
          %1283 = vmatprep.subr.mxu0 0.0
          %1284 = vmatpush1.msra.mxu0 0.0
          %1285 = vmatprep.subr.mxu0 0.0
          %1286 = vmatpush1.msra.mxu0 0.0
          %1287 = vmatprep.subr.mxu0 0.0
          %1288 = vmatpush1.msra.mxu0 0.0
          %1289 = vmatprep.subr.mxu0 0.0
          %1290 = vmatpush1.msra.mxu0 0.0
          %1291 = vmatprep.subr.mxu0 0.0
          %1292 = vmatpush1.msra.mxu0 0.0
          %1293 = vmatprep.subr.mxu0 0.0
          %1294 = vmatpush1.msra.mxu0 0.0
          %1295 = vmatprep.subr.mxu0 0.0
          %1296 = vmatpush1.msra.mxu0 0.0
          %1297 = vmatprep.subr.mxu0 0.0
          %1298 = vmatpush1.msra.mxu0 0.0
          %1299 = vmatprep.subr.mxu0 0.0
          %1300 = vmatpush1.msra.mxu0 0.0
          %1301 = vmatprep.subr.mxu0 0.0
          %1302 = vmatpush1.msra.mxu0 0.0
          %1303 = vmatprep.subr.mxu0 0.0
          %1304 = vmatpush1.msra.mxu0 0.0
          %1305 = vmatprep.subr.mxu0 0.0
          %1306 = vmatpush1.msra.mxu0 0.0
          %1307 = vmatprep.mubr.f32.mxu0 0.0
          %1308 = vmatmul.mubr.f32.gmra.mrb[0].mxu0 %v1241
          %v1309 = vpop.f32.mrb[0].mxu0
          %v1310 = vadd.f32 0.0, %v1309
          %v1311 = vpop.f32.mrb[0].mxu0
          %1312 = vdwg.mxu0
          %v1314 = vsel %vm284, %v1081, 0
          %1316 = vmatprep.subr.mxu0 0.0
          %1317 = vmatpush1.msra.mxu0 %v1237
          %1318 = vmatprep.subr.mxu0 0.0
          %1319 = vmatpush1.msra.mxu0 0.0
          %1320 = vmatprep.subr.mxu0 0.0
          %1321 = vmatpush1.msra.mxu0 0.0
          %1322 = vmatprep.subr.mxu0 0.0
          %1323 = vmatpush1.msra.mxu0 0.0
          %1324 = vmatprep.subr.mxu0 0.0
          %1325 = vmatpush1.msra.mxu0 0.0
          %1326 = vmatprep.subr.mxu0 0.0
          %1327 = vmatpush1.msra.mxu0 0.0
          %1328 = vmatprep.subr.mxu0 0.0
          %1329 = vmatpush1.msra.mxu0 0.0
          %1330 = vmatprep.subr.mxu0 0.0
          %1331 = vmatpush1.msra.mxu0 0.0
          %1332 = vmatprep.subr.mxu0 0.0
          %1333 = vmatpush1.msra.mxu0 0.0
          %1334 = vmatprep.subr.mxu0 0.0
          %1335 = vmatpush1.msra.mxu0 0.0
          %1336 = vmatprep.subr.mxu0 0.0
          %1337 = vmatpush1.msra.mxu0 0.0
          %1338 = vmatprep.subr.mxu0 0.0
          %1339 = vmatpush1.msra.mxu0 0.0
          %1340 = vmatprep.subr.mxu0 0.0
          %1341 = vmatpush1.msra.mxu0 0.0
          %1342 = vmatprep.subr.mxu0 0.0
          %1343 = vmatpush1.msra.mxu0 0.0
          %1344 = vmatprep.subr.mxu0 0.0
          %1345 = vmatpush1.msra.mxu0 0.0
          %1346 = vmatprep.subr.mxu0 0.0
          %1347 = vmatpush1.msra.mxu0 0.0
          %1348 = vmatprep.subr.mxu0 0.0
          %1349 = vmatpush1.msra.mxu0 0.0
          %1350 = vmatprep.subr.mxu0 0.0
          %1351 = vmatpush1.msra.mxu0 0.0
          %1352 = vmatprep.subr.mxu0 0.0
          %1353 = vmatpush1.msra.mxu0 0.0
          %1354 = vmatprep.subr.mxu0 0.0
          %1355 = vmatpush1.msra.mxu0 0.0
          %1356 = vmatprep.subr.mxu0 0.0
          %1357 = vmatpush1.msra.mxu0 0.0
          %1358 = vmatprep.subr.mxu0 0.0
          %1359 = vmatpush1.msra.mxu0 0.0
          %1360 = vmatprep.subr.mxu0 0.0
          %1361 = vmatpush1.msra.mxu0 0.0
          %1362 = vmatprep.subr.mxu0 0.0
          %1363 = vmatpush1.msra.mxu0 0.0
          %1364 = vmatprep.subr.mxu0 0.0
          %1365 = vmatpush1.msra.mxu0 0.0
          %1366 = vmatprep.subr.mxu0 0.0
          %1367 = vmatpush1.msra.mxu0 0.0
          %1368 = vmatprep.subr.mxu0 0.0
          %1369 = vmatpush1.msra.mxu0 0.0
          %1370 = vmatprep.subr.mxu0 0.0
          %1371 = vmatpush1.msra.mxu0 0.0
          %1372 = vmatprep.subr.mxu0 0.0
          %1373 = vmatpush1.msra.mxu0 0.0
          %1374 = vmatprep.subr.mxu0 0.0
          %1375 = vmatpush1.msra.mxu0 0.0
          %1376 = vmatprep.subr.mxu0 0.0
          %1377 = vmatpush1.msra.mxu0 0.0
          %1378 = vmatprep.subr.mxu0 0.0
          %1379 = vmatpush1.msra.mxu0 0.0
          %1380 = vmatprep.mubr.f32.mxu0 0.0
          %1381 = vmatmul.mubr.f32.gmra.mrb[0].mxu0 %v1314
          %v1382 = vpop.f32.mrb[0].mxu0
          %v1383 = vadd.f32 0.0, %v1382
          %v1384 = vpop.f32.mrb[0].mxu0
          %1385 = vdwg.mxu0
          %v1387 = vsel %vm284, %v1157, 0
          %1389 = vmatprep.subr.mxu0 0.0
          %1390 = vmatpush1.msra.mxu0 %v1238
          %1391 = vmatprep.subr.mxu0 0.0
          %1392 = vmatpush1.msra.mxu0 0.0
          %1393 = vmatprep.subr.mxu0 0.0
          %1394 = vmatpush1.msra.mxu0 0.0
          %1395 = vmatprep.subr.mxu0 0.0
          %1396 = vmatpush1.msra.mxu0 0.0
          %1397 = vmatprep.subr.mxu0 0.0
          %1398 = vmatpush1.msra.mxu0 0.0
          %1399 = vmatprep.subr.mxu0 0.0
          %1400 = vmatpush1.msra.mxu0 0.0
          %1401 = vmatprep.subr.mxu0 0.0
          %1402 = vmatpush1.msra.mxu0 0.0
          %1403 = vmatprep.subr.mxu0 0.0
          %1404 = vmatpush1.msra.mxu0 0.0
          %1405 = vmatprep.subr.mxu0 0.0
          %1406 = vmatpush1.msra.mxu0 0.0
          %1407 = vmatprep.subr.mxu0 0.0
          %1408 = vmatpush1.msra.mxu0 0.0
          %1409 = vmatprep.subr.mxu0 0.0
          %1410 = vmatpush1.msra.mxu0 0.0
          %1411 = vmatprep.subr.mxu0 0.0
          %1412 = vmatpush1.msra.mxu0 0.0
          %1413 = vmatprep.subr.mxu0 0.0
          %1414 = vmatpush1.msra.mxu0 0.0
          %1415 = vmatprep.subr.mxu0 0.0
          %1416 = vmatpush1.msra.mxu0 0.0
          %1417 = vmatprep.subr.mxu0 0.0
          %1418 = vmatpush1.msra.mxu0 0.0
          %1419 = vmatprep.subr.mxu0 0.0
          %1420 = vmatpush1.msra.mxu0 0.0
          %1421 = vmatprep.subr.mxu0 0.0
          %1422 = vmatpush1.msra.mxu0 0.0
          %1423 = vmatprep.subr.mxu0 0.0
          %1424 = vmatpush1.msra.mxu0 0.0
          %1425 = vmatprep.subr.mxu0 0.0
          %1426 = vmatpush1.msra.mxu0 0.0
          %1427 = vmatprep.subr.mxu0 0.0
          %1428 = vmatpush1.msra.mxu0 0.0
          %1429 = vmatprep.subr.mxu0 0.0
          %1430 = vmatpush1.msra.mxu0 0.0
          %1431 = vmatprep.subr.mxu0 0.0
          %1432 = vmatpush1.msra.mxu0 0.0
          %1433 = vmatprep.subr.mxu0 0.0
          %1434 = vmatpush1.msra.mxu0 0.0
          %1435 = vmatprep.subr.mxu0 0.0
          %1436 = vmatpush1.msra.mxu0 0.0
          %1437 = vmatprep.subr.mxu0 0.0
          %1438 = vmatpush1.msra.mxu0 0.0
          %1439 = vmatprep.subr.mxu0 0.0
          %1440 = vmatpush1.msra.mxu0 0.0
          %1441 = vmatprep.subr.mxu0 0.0
          %1442 = vmatpush1.msra.mxu0 0.0
          %1443 = vmatprep.subr.mxu0 0.0
          %1444 = vmatpush1.msra.mxu0 0.0
          %1445 = vmatprep.subr.mxu0 0.0
          %1446 = vmatpush1.msra.mxu0 0.0
          %1447 = vmatprep.subr.mxu0 0.0
          %1448 = vmatpush1.msra.mxu0 0.0
          %1449 = vmatprep.subr.mxu0 0.0
          %1450 = vmatpush1.msra.mxu0 0.0
          %1451 = vmatprep.subr.mxu0 0.0
          %1452 = vmatpush1.msra.mxu0 0.0
          %1453 = vmatprep.mubr.f32.mxu0 0.0
          %1454 = vmatmul.mubr.f32.gmra.mrb[0].mxu0 %v1387
          %v1455 = vpop.f32.mrb[0].mxu0
          %v1456 = vadd.f32 0.0, %v1455
          %v1457 = vpop.f32.mrb[0].mxu0
          %1458 = vdwg.mxu0
          %v1460 = vsel %vm284, %v1233, 0
          %1462 = vmatprep.subr.mxu0 0.0
          %1463 = vmatpush1.msra.mxu0 %v1239
          %1464 = vmatprep.subr.mxu0 0.0
          %1465 = vmatpush1.msra.mxu0 0.0
          %1466 = vmatprep.subr.mxu0 0.0
          %1467 = vmatpush1.msra.mxu0 0.0
          %1468 = vmatprep.subr.mxu0 0.0
          %1469 = vmatpush1.msra.mxu0 0.0
          %1470 = vmatprep.subr.mxu0 0.0
          %1471 = vmatpush1.msra.mxu0 0.0
          %1472 = vmatprep.subr.mxu0 0.0
          %1473 = vmatpush1.msra.mxu0 0.0
          %1474 = vmatprep.subr.mxu0 0.0
          %1475 = vmatpush1.msra.mxu0 0.0
          %1476 = vmatprep.subr.mxu0 0.0
          %1477 = vmatpush1.msra.mxu0 0.0
          %1478 = vmatprep.subr.mxu0 0.0
          %1479 = vmatpush1.msra.mxu0 0.0
          %1480 = vmatprep.subr.mxu0 0.0
          %1481 = vmatpush1.msra.mxu0 0.0
          %1482 = vmatprep.subr.mxu0 0.0
          %1483 = vmatpush1.msra.mxu0 0.0
          %1484 = vmatprep.subr.mxu0 0.0
          %1485 = vmatpush1.msra.mxu0 0.0
          %1486 = vmatprep.subr.mxu0 0.0
          %1487 = vmatpush1.msra.mxu0 0.0
          %1488 = vmatprep.subr.mxu0 0.0
          %1489 = vmatpush1.msra.mxu0 0.0
          %1490 = vmatprep.subr.mxu0 0.0
          %1491 = vmatpush1.msra.mxu0 0.0
          %1492 = vmatprep.subr.mxu0 0.0
          %1493 = vmatpush1.msra.mxu0 0.0
          %1494 = vmatprep.subr.mxu0 0.0
          %1495 = vmatpush1.msra.mxu0 0.0
          %1496 = vmatprep.subr.mxu0 0.0
          %1497 = vmatpush1.msra.mxu0 0.0
          %1498 = vmatprep.subr.mxu0 0.0
          %1499 = vmatpush1.msra.mxu0 0.0
          %1500 = vmatprep.subr.mxu0 0.0
          %1501 = vmatpush1.msra.mxu0 0.0
          %1502 = vmatprep.subr.mxu0 0.0
          %1503 = vmatpush1.msra.mxu0 0.0
          %1504 = vmatprep.subr.mxu0 0.0
          %1505 = vmatpush1.msra.mxu0 0.0
          %1506 = vmatprep.subr.mxu0 0.0
          %1507 = vmatpush1.msra.mxu0 0.0
          %1508 = vmatprep.subr.mxu0 0.0
          %1509 = vmatpush1.msra.mxu0 0.0
          %1510 = vmatprep.subr.mxu0 0.0
          %1511 = vmatpush1.msra.mxu0 0.0
          %1512 = vmatprep.subr.mxu0 0.0
          %1513 = vmatpush1.msra.mxu0 0.0
          %1514 = vmatprep.subr.mxu0 0.0
          %1515 = vmatpush1.msra.mxu0 0.0
          %1516 = vmatprep.subr.mxu0 0.0
          %1517 = vmatpush1.msra.mxu0 0.0
          %1518 = vmatprep.subr.mxu0 0.0
          %1519 = vmatpush1.msra.mxu0 0.0
          %1520 = vmatprep.subr.mxu0 0.0
          %1521 = vmatpush1.msra.mxu0 0.0
          %1522 = vmatprep.subr.mxu0 0.0
          %1523 = vmatpush1.msra.mxu0 0.0
          %1524 = vmatprep.subr.mxu0 0.0
          %1525 = vmatpush1.msra.mxu0 0.0
          %1526 = vmatprep.mubr.f32.mxu0 0.0
          %1527 = vmatmul.mubr.f32.gmra.mrb[0].mxu0 %v1460
          %v1528 = vpop.f32.mrb[0].mxu0
          %v1529 = vadd.f32 0.0, %v1528
          %v1530 = vpop.f32.mrb[0].mxu0
          %1531 = vdwg.mxu0
          %v1532 = vsel %vm284, %v1310, 0.0
          %v1533 = vsel %vm284, %v1383, 0.0
          %v1534 = vadd.f32 %v1532, %v1533
          %v1535 = vsel %vm284, %v1456, 0.0
          %v1536 = vadd.f32 %v1534, %v1535
          %v1537 = vsel %vm284, %v1529, 0.0
          %v1538 = vadd.f32 %v1536, %v1537
          %1539 = vst.msk [vmem:[%s252] sm:$0xff] %vm284, %v1538
        $region52: #{tpu_custom_call.1} parent=39 // pred_fallthru
          _
        %s1540 = sand.u32 %s152, 1
        %s1541 = scalar_lea.sflag [#allocation7], %s1540
        %s1542 = sand.u32 %s152, 1
        %s1543 = smul.addr %s1542, 8
        %s1544 = scalar_lea.vmem [#allocation8], %s1543
        // Predicated region
        $region53: #{tpu_custom_call.1} parent=39 // pred_check
          %p1545 = pneg %p162
        $region54: #{tpu_custom_call.1} parent=39 // pred_check_branch
          %1547 = sbr.rel (%p1545) target = $region56
        $region55: #{tpu_custom_call.1} parent=39 // pred_region
          %s1549 = ssub.s32 128, 128
          %1550 = vsyncadd %s1541, %s1549
          %s1551 = smul.addr %s24, 128
          %s1552 = scalar_lea.hbm %s5, %s1551
          %s1554 = sshll.u32 %s1544, 4
          %s1555 = int_to_ptr.vmem [resolvable:$true] %s1554
          %1557 = dma.vmem_to_hbm [thread:$0]  %s1555, 128, %s1552, %s1541
        $region56: #{tpu_custom_call.1} parent=39 // pred_fallthru
          _
      $region40: #{tpu_custom_call.1} parent=5 // pred_fallthru
        _
      %p1558 = scmp.le.s32.totalorder 2, %s15
      // Predicated region
      $region57: #{tpu_custom_call.1} parent=5 // pred_check
        %p1559 = pneg %p1558
      $region58: #{tpu_custom_call.1} parent=5 // pred_check_branch
        %1561 = sbr.rel (%p1559) target = $region60
      $region59: #{tpu_custom_call.1} parent=5 // pred_region
        %s1562 = ssub.s32 %s15, 2
        // Predicated region
        $region61: #{tpu_custom_call.1} parent=59 // pred_check
          %p1563 = pneg %p168
        $region62: #{tpu_custom_call.1} parent=59 // pred_check_branch
          %1565 = sbr.rel (%p1563) target = $region64
        $region63: #{tpu_custom_call.1} parent=59 // pred_region
          %s1566 = sand.u32 %s153, 1
          %s1567 = scalar_lea.sflag [#allocation7], %s1566
          %s1568 = sand.u32 %s153, 1
          %s1569 = smul.addr %s1568, 8
          %s1570 = scalar_lea.vmem [#allocation8], %s1569
          %1571 = dma.done %s1567, 128
        $region64: #{tpu_custom_call.1} parent=59 // pred_fallthru
          _
      $region60: #{tpu_custom_call.1} parent=5 // pred_fallthru
        _
    $region6: #{tpu_custom_call.1} parent=1 // loop_footer
      %s19 = sadd.s32 1, %s15
    $region7: #{tpu_custom_call.1} parent=1 // loop_footer_branch
      %14 = sbr.rel target = $region3
    $region8: #{tpu_custom_call.1} parent=1 // loop_exit
      _
    %1572 = vsyncpa [#allocation6], 1
    %s1573 = scalar_lea.sflag [#allocation6], 1
    %1574 = vsyncpa %s1573, 1
    %1575 = vsyncpa [#allocation7], 1
    %s1576 = scalar_lea.sflag [#allocation7], 1
    %1577 = vsyncpa %s1576, 1

</llo_original>
